<compile_context>
chip_gen: v5e
topology: v5e:2x2
jax: 0.10.0
libtpu: 0.0.40
codegen_flags: <defaults>
</compile_context>

<pallas_src>
import jax
import jax.numpy as jnp
from jax.experimental import pallas as pl
from jax.experimental.pallas import tpu as pltpu


def net_kernel(p_ref, wc_ref, bc_ref, wf_ref, bf_ref, out_ref):
    # p_ref  : (bt, 36)    im2col patches, flat index = k*9 + s (k = kh*2+kw, s = oh*3+ow)
    # wc_ref : (36, 225)   block-structured conv weight: [k*9+s, c*9+s'] = wc[c,k] * (s==s')
    # bc_ref : (1, 225)    conv bias repeated over the 9 spatial positions
    # wf_ref : (225, 625)  block-diagonal fc1 weight: [c*9+s, c'*25+o] = (c==c') * fc_w[o,s]
    # bf_ref : (1, 625)    fc1 bias tiled over the 25 channels
    # out_ref: (bt, 625)   softmax output, flat index = c*25 + o (softmax over c)
    bt = p_ref.shape[0]

    # conv1 (2x2, 1 -> 25 channels) as a single 2D MXU matmul, then bias + ReLU.
    h = jnp.dot(p_ref[...], wc_ref[...], preferred_element_type=jnp.float32)
    h = jnp.maximum(h + bc_ref[...], 0.0)                       # (bt, 225)

    # TODO(synk): `self.pool` is undefined in the reference module; treated as identity.

    # fc1 (Linear(9,25) applied per conv channel) as a single 2D MXU matmul, bias + ReLU.
    # Result is directly lane-dense (bt, 625).
    y = jnp.dot(h, wf_ref[...], preferred_element_type=jnp.float32)
    y = jnp.maximum(y + bf_ref[...], 0.0)                       # (bt, 625)

    # Softmax over the 25 conv channels (dim=1 of (N,25,25)).
    # Stabilize with the per-row global max: it is >= every per-(b,o) group max, so the
    # result is identical while the exp stays lane-dense over all 625 lanes.
    m = jnp.max(y, axis=-1, keepdims=True)                      # (bt, 1)
    e = jnp.exp(y - m)                                          # (bt, 625), EUP at full lanes

    # Exact normalization (review: approx reciprocal reverted; normalization stays f32).
    e3 = e.reshape(bt, 25, 25)                                  # cheap in-kernel relayout
    s = jnp.sum(e3, axis=1, keepdims=True)                      # (bt, 1, 25), exact f32 sums
    out3 = e3 * pl.reciprocal(s, approx=False)                  # exact reciprocal
    out_ref[...] = out3.reshape(bt, 625)                        # lane-dense store


def im2col_2x2_flat(x):
    """x: (N, 1, H, W) -> (N, 4*(H-1)*(W-1)); flat index = k*9 + oh*(W-1) + ow, k = kh*2+kw."""
    n, c, h, w = x.shape
    assert c == 1
    p = jnp.stack(
        [
            x[:, 0, :-1, :-1],  # (kh=0, kw=0)
            x[:, 0, :-1, 1:],   # (kh=0, kw=1)
            x[:, 0, 1:, :-1],   # (kh=1, kw=0)
            x[:, 0, 1:, 1:],    # (kh=1, kw=1)
        ],
        axis=1,
    )                                                # (N, 4, H-1, W-1)
    return p.reshape(n, 4 * (h - 1) * (w - 1))       # (N, 36)


def _round_up(a, m):
    return ((a + m - 1) // m) * m


def net_forward(x, params, *, block_batch=512):
    """x: (N, 1, 4, 4) float32 NCHW. Returns (N, 25, 25), softmax over axis 1."""
    conv_w, conv_b, fc_w, fc_b = params
    n = x.shape[0]

    block_batch = max(8, _round_up(block_batch, 8))
    bt = min(block_batch, _round_up(n, 8))
    # v7x megacore: with a "parallel" grid axis the 2nd TensorCore only gets work when the
    # grid has >= 2 steps; split the batch when there is enough work.
    if n >= 16 and _round_up(n, bt) // bt < 2:
        bt = _round_up(pl.cdiv(_round_up(n, 8), 2), 8)
    n_pad = _round_up(n, bt)

    patches = im2col_2x2_flat(x)                     # (N, 36)
    if n_pad != n:
        patches = jnp.pad(patches, ((0, n_pad - n), (0, 0)))

    # Block-structured conv weight: Wc[k*9+s, c*9+s'] = conv_w[c,0,kh,kw] * (s == s').
    wc = conv_w.reshape(25, 4)                       # (Cout, kh*kw)
    eye9 = jnp.eye(9, dtype=jnp.float32)
    wc_big = jnp.einsum("ck,st->ksct", wc, eye9).reshape(36, 225)
    bc_flat = jnp.repeat(conv_b, 9).reshape(1, 225)  # [c*9+s] = conv_b[c]

    # Block-diagonal fc1 weight: Wf[c*9+s, c'*25+o] = (c == c') * fc_w[o, s].
    wft = fc_w.T                                     # (9, 25)
    eye25 = jnp.eye(25, dtype=jnp.float32)
    wf_big = jnp.einsum("cd,so->csdo", eye25, wft).reshape(225, 625)
    bf_flat = jnp.tile(fc_b, 25).reshape(1, 625)     # [c*25+o] = fc_b[o]

    out = pl.pallas_call(
        net_kernel,
        out_shape=jax.ShapeDtypeStruct((n_pad, 625), jnp.float32),
        grid_spec=pltpu.PrefetchScalarGridSpec(
            num_scalar_prefetch=0,
            grid=(n_pad // bt,),
            in_specs=[
                pl.BlockSpec((bt, 36), lambda i: (i, 0)),
                pl.BlockSpec((36, 225), lambda i: (0, 0)),
                pl.BlockSpec((1, 225), lambda i: (0, 0)),
                pl.BlockSpec((225, 625), lambda i: (0, 0)),
                pl.BlockSpec((1, 625), lambda i: (0, 0)),
            ],
            out_specs=pl.BlockSpec((bt, 625), lambda i: (i, 0)),
        ),
        compiler_params=pltpu.CompilerParams(
            dimension_semantics=("parallel",),
            # ~10 MB actually used at bt=512; 48 MB leaves headroom for larger tiles and is
            # safe on all generations (v5e/v6e: 128 MiB physical, v7x: 64 MiB physical).
            vmem_limit_bytes=48 * 1024 * 1024,
        ),
    )(patches, wc_big, bc_flat, wf_big, bf_flat)

    return out[:n].reshape(n, 25, 25)                # free relayout in the wrapper


def init_params(key):
    """Deterministic synthetic parameters matching the PyTorch module's shapes."""
    k1, k2, k3, k4 = jax.random.split(key, 4)
    conv_w = jax.random.uniform(k1, (25, 1, 2, 2), jnp.float32, -0.5, 0.5)      # Conv2d(1,25,(2,2)).weight
    conv_b = jax.random.uniform(k2, (25,), jnp.float32, -0.5, 0.5)              # Conv2d bias
    fc_w = jax.random.uniform(k3, (25, 9), jnp.float32, -1.0 / 3.0, 1.0 / 3.0)  # Linear(9,25).weight
    fc_b = jax.random.uniform(k4, (25,), jnp.float32, -1.0 / 3.0, 1.0 / 3.0)    # Linear bias
    return conv_w, conv_b, fc_w, fc_b


if __name__ == "__main__":
    key = jax.random.PRNGKey(0)
    kx, kp = jax.random.split(key)

    # Small input consistent with the module: batch=2, 1 channel, 4x4 board
    # (conv 2x2 -> 3x3 = 9 spatial positions, matching fc1's 9 input features).
    x = jax.random.normal(kx, (2, 1, 4, 4), jnp.float32)
    params = init_params(kp)

    out = net_forward(x, params)
    out = jax.block_until_ready(out)

    assert out.shape == (2, 25, 25)
    assert bool(jnp.all(jnp.isfinite(out)))
    # Softmax over dim=1 must sum to ~1; normalization is exact f32 now, so the
    # tolerance is tight again (review correctness feedback).
    col_sums = jnp.sum(out, axis=1)
    assert bool(jnp.allclose(col_sums, 1.0, atol=1e-4))

    print("KERNEL_OK")
</pallas_src>

<mosaic_0001>
module attributes {stable_mosaic.version = 11 : i64} {
  func.func @net_kernel(%arg0: i32, %arg1: memref<8x36xf32, #tpu.memory_space<vmem>>, %arg2: memref<36x225xf32, #tpu.memory_space<vmem>>, %arg3: memref<1x225xf32, #tpu.memory_space<vmem>>, %arg4: memref<225x625xf32, #tpu.memory_space<vmem>>, %arg5: memref<1x625xf32, #tpu.memory_space<vmem>>, %arg6: memref<8x625xf32, #tpu.memory_space<vmem>>) attributes {dimension_semantics = [#tpu.dimension_semantics<parallel>], iteration_bounds = array<i64: 1>, scalar_prefetch = 0 : i64, scratch_operands = 0 : i64, tpu.core_type = #tpu.core_type<tc>, window_params = [{transform_indices = @transform_0, window_bounds = array<i64: 8, 36>}, {pipeline_mode = #tpu.pipeline_mode<synchronous>, transform_indices = @transform_1, window_bounds = array<i64: 36, 225>}, {pipeline_mode = #tpu.pipeline_mode<synchronous>, transform_indices = @transform_2, window_bounds = array<i64: 1, 225>}, {pipeline_mode = #tpu.pipeline_mode<synchronous>, transform_indices = @transform_3, window_bounds = array<i64: 225, 625>}, {pipeline_mode = #tpu.pipeline_mode<synchronous>, transform_indices = @transform_4, window_bounds = array<i64: 1, 625>}, {transform_indices = @transform_5, window_bounds = array<i64: 8, 625>}]} {
    %c0 = arith.constant 0 : index
    %c0_0 = arith.constant 0 : index
    %0 = vector.load %arg1[%c0, %c0_0] : memref<8x36xf32, #tpu.memory_space<vmem>>, vector<8x36xf32>
    %c0_1 = arith.constant 0 : index
    %c0_2 = arith.constant 0 : index
    %1 = vector.load %arg2[%c0_1, %c0_2] : memref<36x225xf32, #tpu.memory_space<vmem>>, vector<36x225xf32>
    %cst = arith.constant dense<0.000000e+00> : vector<8x225xf32>
    %2 = tpu.matmul %0, %1, %cst {dimension_numbers = #tpu.dot_dimension_numbers<[1], [0], [0], [1], [0, 0, 1, 1], [], []>} : vector<8x36xf32>, vector<36x225xf32>, vector<8x225xf32> -> vector<8x225xf32>
    %c0_3 = arith.constant 0 : index
    %c0_4 = arith.constant 0 : index
    %3 = vector.load %arg3[%c0_3, %c0_4] : memref<1x225xf32, #tpu.memory_space<vmem>>, vector<1x225xf32>
    %4 = vector.broadcast %3 : vector<1x225xf32> to vector<8x225xf32>
    %5 = arith.addf %2, %4 : vector<8x225xf32>
    %cst_5 = arith.constant 0.000000e+00 : f32
    %6 = vector.broadcast %cst_5 : f32 to vector<8x225xf32>
    %7 = arith.maximumf %5, %6 : vector<8x225xf32>
    %c0_6 = arith.constant 0 : index
    %c0_7 = arith.constant 0 : index
    %8 = vector.load %arg4[%c0_6, %c0_7] : memref<225x625xf32, #tpu.memory_space<vmem>>, vector<225x625xf32>
    %cst_8 = arith.constant dense<0.000000e+00> : vector<8x625xf32>
    %9 = tpu.matmul %7, %8, %cst_8 {dimension_numbers = #tpu.dot_dimension_numbers<[1], [0], [0], [1], [0, 0, 1, 1], [], []>} : vector<8x225xf32>, vector<225x625xf32>, vector<8x625xf32> -> vector<8x625xf32>
    %c0_9 = arith.constant 0 : index
    %c0_10 = arith.constant 0 : index
    %10 = vector.load %arg5[%c0_9, %c0_10] : memref<1x625xf32, #tpu.memory_space<vmem>>, vector<1x625xf32>
    %11 = vector.broadcast %10 : vector<1x625xf32> to vector<8x625xf32>
    %12 = arith.addf %9, %11 : vector<8x625xf32>
    %cst_11 = arith.constant 0.000000e+00 : f32
    %13 = vector.broadcast %cst_11 : f32 to vector<8x625xf32>
    %14 = arith.maximumf %12, %13 : vector<8x625xf32>
    %cst_12 = arith.constant dense<0xFF800000> : vector<8xf32>
    %15 = vector.multi_reduction <maximumf>, %14, %cst_12 [1] : vector<8x625xf32> to vector<8xf32>
    %16 = vector.shape_cast %15 : vector<8xf32> to vector<8x1xf32>
    %17 = vector.broadcast %16 : vector<8x1xf32> to vector<8x625xf32>
    %18 = arith.subf %14, %17 : vector<8x625xf32>
    %19 = math.exp %18 : vector<8x625xf32>
    %20 = vector.shape_cast %19 : vector<8x625xf32> to vector<8x25x25xf32>
    %cst_13 = arith.constant dense<0.000000e+00> : vector<8x25xf32>
    %21 = vector.multi_reduction <add>, %20, %cst_13 [1] : vector<8x25x25xf32> to vector<8x25xf32>
    %22 = vector.shape_cast %21 : vector<8x25xf32> to vector<8x1x25xf32>
    %23 = tpu.reciprocal %22 : vector<8x1x25xf32> -> vector<8x1x25xf32>
    %24 = vector.broadcast %23 : vector<8x1x25xf32> to vector<8x25x25xf32>
    %25 = arith.mulf %20, %24 : vector<8x25x25xf32>
    %26 = vector.shape_cast %25 : vector<8x25x25xf32> to vector<8x625xf32>
    %c0_14 = arith.constant 0 : index
    %c0_15 = arith.constant 0 : index
    %27 = vector.load %arg6[%c0_14, %c0_15] : memref<8x625xf32, #tpu.memory_space<vmem>>, vector<8x625xf32>
    tpu.vector_store %arg6[%c0_14, %c0_15], %26 {strides = array<i32>} : memref<8x625xf32, #tpu.memory_space<vmem>>, vector<8x625xf32>,
    return
  }
  func.func @transform_0(%arg0: i32) -> (i32, i32) {
    %c0_i32 = arith.constant 0 : i32
    %c0_i32_0 = arith.constant 0 : i32
    return %arg0, %c0_i32 : i32, i32
  }
  func.func @transform_1(%arg0: i32) -> (i32, i32) {
    %c0_i32 = arith.constant 0 : i32
    %c0_i32_0 = arith.constant 0 : i32
    %c0_i32_1 = arith.constant 0 : i32
    return %c0_i32, %c0_i32_0 : i32, i32
  }
  func.func @transform_2(%arg0: i32) -> (i32, i32) {
    %c0_i32 = arith.constant 0 : i32
    %c0_i32_0 = arith.constant 0 : i32
    %c0_i32_1 = arith.constant 0 : i32
    return %c0_i32, %c0_i32_0 : i32, i32
  }
  func.func @transform_3(%arg0: i32) -> (i32, i32) {
    %c0_i32 = arith.constant 0 : i32
    %c0_i32_0 = arith.constant 0 : i32
    %c0_i32_1 = arith.constant 0 : i32
    return %c0_i32, %c0_i32_0 : i32, i32
  }
  func.func @transform_4(%arg0: i32) -> (i32, i32) {
    %c0_i32 = arith.constant 0 : i32
    %c0_i32_0 = arith.constant 0 : i32
    %c0_i32_1 = arith.constant 0 : i32
    return %c0_i32, %c0_i32_0 : i32, i32
  }
  func.func @transform_5(%arg0: i32) -> (i32, i32) {
    %c0_i32 = arith.constant 0 : i32
    %c0_i32_0 = arith.constant 0 : i32
    return %arg0, %c0_i32 : i32, i32
  }
}

</mosaic_0001>

<llo_original>
// kernel: tpu_custom_call.1
$region0: #{tpu_custom_call.1}
  #allocation0 [shape = 'u32[]', space=smem, size = 0x4, offset = 0x4, fixed_abs, tag = 'smem constant byte address 0x4 - core index']
  #allocation1 [shape = 'u32[72,128]{1,0:T(1,128)}', space=vmem, size = 0x9000, scoped, tag = 'internal scratch']
  %s0 = inlined_call_operand.hbm [shape: f32[8,36], index: 0, kind: input, shape index: {}]
  %s1 = inlined_call_operand.hbm [shape: f32[36,225], index: 1, kind: input, shape index: {}]
  %s2 = inlined_call_operand.hbm [shape: f32[1,225], index: 2, kind: input, shape index: {}]
  %s3 = inlined_call_operand.hbm [shape: f32[225,625], index: 3, kind: input, shape index: {}]
  %s4 = inlined_call_operand.hbm [shape: f32[1,625], index: 4, kind: input, shape index: {}]
  %s5 = inlined_call_operand.hbm [shape: f32[8,625], index: 5, kind: output, shape index: {}]
  %s6 = sld [smem:[#allocation0]]
  $region50: #{tpu_custom_call.1} parent=0
    _
  %s8 = ssub.s32 1, %s6
  %s9 = scalar_select 0, %s8, %s6
  $region1: #{tpu_custom_call.1} parent=0
    #allocation2 [shape = 'u8[4096]{0}', space=vmem, size = 0x1000, scoped, tag = 'input window, operand 0, single buffered']
    #allocation3 [shape = 's32[1]{0}', space=sflag, size = 0x4, scoped, tag = 'scoped memory for tpu_custom_call.1']
    #allocation4 [shape = 's32[1]{0}', space=sflag, size = 0x4, scoped, tag = 'scoped memory for tpu_custom_call.1']
    #allocation5 [shape = 'u8[40960]{0}', space=vmem, size = 0xa000, scoped, tag = 'input window, operand 1, single buffered']
    #allocation6 [shape = 's32[1]{0}', space=sflag, size = 0x4, scoped, tag = 'scoped memory for tpu_custom_call.1']
    #allocation7 [shape = 'u8[1024]{0}', space=vmem, size = 0x400, scoped, tag = 'input window, operand 2, single buffered']
    #allocation8 [shape = 'u8[593920]{0}', space=vmem, size = 0x91000, scoped, tag = 'input window, operand 3, single buffered']
    #allocation9 [shape = 's32[1]{0}', space=sflag, size = 0x4, scoped, tag = 'scoped memory for tpu_custom_call.1']
    #allocation10 [shape = 'u8[2560]{0}', space=vmem, size = 0xc00, scoped, tag = 'input window, operand 4, single buffered']
    #allocation11 [shape = 'u8[20480]{0}', space=vmem, size = 0x5000, scoped, tag = 'output window, operand 0, single buffered']
    %10 = vsyncpa [#allocation3], 0
    %11 = vsyncpa [#allocation6], 0
    %12 = vsyncpa [#allocation9], 0
    %13 = vsyncpa [#allocation4], 0
    // Predicated region
    $region2: #{tpu_custom_call.1} parent=1 // pred_check
      _
    $region3: #{tpu_custom_call.1} parent=1 // pred_check_branch
      %15 = sbr.rel (0) target = $region5
    $region4: #{tpu_custom_call.1} parent=1 // pred_region
      %17 = vsyncadd [#allocation3], 0
      %s19 = sshll.u32 %s0, 4
      %s20 = int_to_ptr.hbm [resolvable:$true] %s19
      %s21 = sshll.u32 [#allocation2], 4
      %s22 = int_to_ptr.vmem [resolvable:$true] %s21
      %24 = dma.hbm_to_vmem [thread:$0]  %s20, 128, %s22, [#allocation3]
    $region5: #{tpu_custom_call.1} parent=1 // pred_fallthru
      _
    // Predicated region
    $region6: #{tpu_custom_call.1} parent=1 // pred_check
      _
    $region7: #{tpu_custom_call.1} parent=1 // pred_check_branch
      %26 = sbr.rel (0) target = $region9
    $region8: #{tpu_custom_call.1} parent=1 // pred_region
      %28 = vsyncadd [#allocation6], 0
      %s29 = sshll.u32 %s1, 4
      %s30 = int_to_ptr.hbm [resolvable:$true] %s29
      %s31 = sshll.u32 [#allocation5], 4
      %s32 = int_to_ptr.vmem [resolvable:$true] %s31
      %37 = dma.hbm_to_vmem [thread:$0]  %s30, 1280, %s32, [#allocation6], 256, 256, 16
    $region9: #{tpu_custom_call.1} parent=1 // pred_fallthru
      _
    // Predicated region
    $region10: #{tpu_custom_call.1} parent=1 // pred_check
      _
    $region11: #{tpu_custom_call.1} parent=1 // pred_check_branch
      %39 = sbr.rel (0) target = $region13
    $region12: #{tpu_custom_call.1} parent=1 // pred_region
      %41 = vsyncadd [#allocation6], 0
      %s43 = sshll.u32 %s2, 4
      %s44 = int_to_ptr.hbm [resolvable:$true] %s43
      %s45 = sshll.u32 [#allocation7], 4
      %s46 = int_to_ptr.vmem [resolvable:$true] %s45
      %48 = dma.hbm_to_vmem [thread:$0]  %s44, 32, %s46, [#allocation6]
    $region13: #{tpu_custom_call.1} parent=1 // pred_fallthru
      _
    // Predicated region
    $region14: #{tpu_custom_call.1} parent=1 // pred_check
      _
    $region15: #{tpu_custom_call.1} parent=1 // pred_check_branch
      %50 = sbr.rel (0) target = $region17
    $region16: #{tpu_custom_call.1} parent=1 // pred_region
      %52 = vsyncadd [#allocation9], 0
      %s53 = sshll.u32 %s3, 4
      %s54 = int_to_ptr.hbm [resolvable:$true] %s53
      %s55 = sshll.u32 [#allocation8], 4
      %s56 = int_to_ptr.vmem [resolvable:$true] %s55
      %61 = dma.hbm_to_vmem [thread:$0]  %s54, 18560, %s56, [#allocation9], 640, 640, 40
    $region17: #{tpu_custom_call.1} parent=1 // pred_fallthru
      _
    // Predicated region
    $region18: #{tpu_custom_call.1} parent=1 // pred_check
      _
    $region19: #{tpu_custom_call.1} parent=1 // pred_check_branch
      %63 = sbr.rel (0) target = $region21
    $region20: #{tpu_custom_call.1} parent=1 // pred_region
      %65 = vsyncadd [#allocation9], 0
      %s67 = sshll.u32 %s4, 4
      %s68 = int_to_ptr.hbm [resolvable:$true] %s67
      %s69 = sshll.u32 [#allocation10], 4
      %s70 = int_to_ptr.vmem [resolvable:$true] %s69
      %72 = dma.hbm_to_vmem [thread:$0]  %s68, 80, %s70, [#allocation9]
    $region21: #{tpu_custom_call.1} parent=1 // pred_fallthru
      _
    // Predicated region
    $region22: #{tpu_custom_call.1} parent=1 // pred_check
      _
    $region23: #{tpu_custom_call.1} parent=1 // pred_check_branch
      %74 = sbr.rel (0) target = $region25
    $region24: #{tpu_custom_call.1} parent=1 // pred_region
      %76 = dma.done [#allocation3], 128
    $region25: #{tpu_custom_call.1} parent=1 // pred_fallthru
      _
    // Predicated region
    $region26: #{tpu_custom_call.1} parent=1 // pred_check
      _
    $region27: #{tpu_custom_call.1} parent=1 // pred_check_branch
      %78 = sbr.rel (0) target = $region29
    $region28: #{tpu_custom_call.1} parent=1 // pred_region
      %80 = dma.done [#allocation6], 1280
    $region29: #{tpu_custom_call.1} parent=1 // pred_fallthru
      _
    // Predicated region
    $region30: #{tpu_custom_call.1} parent=1 // pred_check
      _
    $region31: #{tpu_custom_call.1} parent=1 // pred_check_branch
      %82 = sbr.rel (0) target = $region33
    $region32: #{tpu_custom_call.1} parent=1 // pred_region
      %84 = dma.done [#allocation6], 32
    $region33: #{tpu_custom_call.1} parent=1 // pred_fallthru
      _
    // Predicated region
    $region34: #{tpu_custom_call.1} parent=1 // pred_check
      _
    $region35: #{tpu_custom_call.1} parent=1 // pred_check_branch
      %86 = sbr.rel (0) target = $region37
    $region36: #{tpu_custom_call.1} parent=1 // pred_region
      %88 = dma.done [#allocation9], 18560
    $region37: #{tpu_custom_call.1} parent=1 // pred_fallthru
      _
    // Predicated region
    $region38: #{tpu_custom_call.1} parent=1 // pred_check
      _
    $region39: #{tpu_custom_call.1} parent=1 // pred_check_branch
      %90 = sbr.rel (0) target = $region41
    $region40: #{tpu_custom_call.1} parent=1 // pred_region
      %92 = dma.done [#allocation9], 80
    $region41: #{tpu_custom_call.1} parent=1 // pred_fallthru
      _
    %v93 = vld [vmem:[#allocation2] sm:$0xff]
    %v94 = vld [vmem:[#allocation5] sm:$0xff]
    %v95 = vld [vmem:[#allocation5 + $0x8] sm:$0xff]
    %v96 = vld [vmem:[#allocation5 + $0x10] sm:$0xff]
    %v97 = vld [vmem:[#allocation5 + $0x18] sm:$0xff]
    %v98 = vld [vmem:[#allocation5 + $0x20] sm:$0xff]
    %v99 = vld [vmem:[#allocation5 + $0x28] sm:$0xff]
    %v100 = vld [vmem:[#allocation5 + $0x30] sm:$0xff]
    %v101 = vld [vmem:[#allocation5 + $0x38] sm:$0xff]
    %v102 = vld [vmem:[#allocation5 + $0x40] sm:$0xf]
    %v103 = vld [vmem:[#allocation5 + $0x48] sm:$0xf]
    %v104 = vld [vmem:[#allocation7] sm:$0x3]
    %v106 = vperm.slane %v104, 0
    %v107 = vperm.slane %v104, 1
    %vm110 = vcmask 293888
    %v112 = vsel %vm110, %v93, 0
    %vm114 = vcmask 1043456
    %v116 = vsel %vm114, %v102, 0
    %v119 = vsel %vm114, %v103, 0
    %121 = vmatpush.msra.mxu0 0.0
    %122 = vmatpush.msra.mxu0 0.0
    %123 = vmatpush.msra.mxu0 0.0
    %124 = vmatpush.msra.mxu0 0.0
    %125 = vmatpush.msra.mxu0 0.0
    %126 = vmatpush.msra.mxu0 0.0
    %127 = vmatpush.msra.mxu0 0.0
    %128 = vmatpush.msra.mxu0 0.0
    %129 = vmatpush.msra.mxu0 0.0
    %130 = vmatpush.msra.mxu0 0.0
    %131 = vmatpush.msra.mxu0 0.0
    %132 = vmatpush.msra.mxu0 %v116
    %133 = vmatpush.msra.mxu0 %v100
    %134 = vmatpush.msra.mxu0 %v98
    %135 = vmatpush.msra.mxu0 %v96
    %136 = vmatpush.msra.mxu0 %v94
    %137 = vmatmul.f32.gmra.mxu0 %v112
    %v138 = vpop.f32.mrf.mxu0
    %v139 = vadd.f32 %v106, %v138
    %140 = vdwg.mxu0
    %141 = vmatpush.msra.mxu0 0.0
    %142 = vmatpush.msra.mxu0 0.0
    %143 = vmatpush.msra.mxu0 0.0
    %144 = vmatpush.msra.mxu0 0.0
    %145 = vmatpush.msra.mxu0 0.0
    %146 = vmatpush.msra.mxu0 0.0
    %147 = vmatpush.msra.mxu0 0.0
    %148 = vmatpush.msra.mxu0 0.0
    %149 = vmatpush.msra.mxu0 0.0
    %150 = vmatpush.msra.mxu0 0.0
    %151 = vmatpush.msra.mxu0 0.0
    %152 = vmatpush.msra.mxu0 %v119
    %153 = vmatpush.msra.mxu0 %v101
    %154 = vmatpush.msra.mxu0 %v99
    %155 = vmatpush.msra.mxu0 %v97
    %156 = vmatpush.msra.mxu0 %v95
    %157 = vmatmul.f32.gmra.mxu0 %v112
    %v158 = vpop.f32.mrf.mxu0
    %v159 = vadd.f32 %v107, %v158
    %160 = vdwg.mxu0
    %v161 = vmax.f32 %v139, 0.0
    %v162 = vmax.f32 %v159, 0.0
    %v163 = vld [vmem:[#allocation8] sm:$0xff]
    %v164 = vld [vmem:[#allocation8 + $0x8] sm:$0xff]
    %v165 = vld [vmem:[#allocation8 + $0x10] sm:$0xff]
    %v166 = vld [vmem:[#allocation8 + $0x18] sm:$0xff]
    %v167 = vld [vmem:[#allocation8 + $0x20] sm:$0xff]
    %v168 = vld [vmem:[#allocation8 + $0x28] sm:$0xff]
    %v169 = vld [vmem:[#allocation8 + $0x30] sm:$0xff]
    %v170 = vld [vmem:[#allocation8 + $0x38] sm:$0xff]
    %v171 = vld [vmem:[#allocation8 + $0x40] sm:$0xff]
    %v172 = vld [vmem:[#allocation8 + $0x48] sm:$0xff]
    %v173 = vld [vmem:[#allocation8 + $0x50] sm:$0xff]
    %v174 = vld [vmem:[#allocation8 + $0x58] sm:$0xff]
    %v175 = vld [vmem:[#allocation8 + $0x60] sm:$0xff]
    %v176 = vld [vmem:[#allocation8 + $0x68] sm:$0xff]
    %v177 = vld [vmem:[#allocation8 + $0x70] sm:$0xff]
    %v178 = vld [vmem:[#allocation8 + $0x78] sm:$0xff]
    %v179 = vld [vmem:[#allocation8 + $0x80] sm:$0xff]
    %v180 = vld [vmem:[#allocation8 + $0x88] sm:$0xff]
    %v181 = vld [vmem:[#allocation8 + $0x90] sm:$0xff]
    %v182 = vld [vmem:[#allocation8 + $0x98] sm:$0xff]
    %v183 = vld [vmem:[#allocation8 + $0xa0] sm:$0xff]
    %v184 = vld [vmem:[#allocation8 + $0xa8] sm:$0xff]
    %v185 = vld [vmem:[#allocation8 + $0xb0] sm:$0xff]
    %v186 = vld [vmem:[#allocation8 + $0xb8] sm:$0xff]
    %v187 = vld [vmem:[#allocation8 + $0xc0] sm:$0xff]
    %v188 = vld [vmem:[#allocation8 + $0xc8] sm:$0xff]
    %v189 = vld [vmem:[#allocation8 + $0xd0] sm:$0xff]
    %v190 = vld [vmem:[#allocation8 + $0xd8] sm:$0xff]
    %v191 = vld [vmem:[#allocation8 + $0xe0] sm:$0xff]
    %v192 = vld [vmem:[#allocation8 + $0xe8] sm:$0xff]
    %v193 = vld [vmem:[#allocation8 + $0xf0] sm:$0xff]
    %v194 = vld [vmem:[#allocation8 + $0xf8] sm:$0xff]
    %v195 = vld [vmem:[#allocation8 + $0x100] sm:$0xff]
    %v196 = vld [vmem:[#allocation8 + $0x108] sm:$0xff]
    %v197 = vld [vmem:[#allocation8 + $0x110] sm:$0xff]
    %v198 = vld [vmem:[#allocation8 + $0x118] sm:$0xff]
    %v199 = vld [vmem:[#allocation8 + $0x120] sm:$0xff]
    %v200 = vld [vmem:[#allocation8 + $0x128] sm:$0xff]
    %v201 = vld [vmem:[#allocation8 + $0x130] sm:$0xff]
    %v202 = vld [vmem:[#allocation8 + $0x138] sm:$0xff]
    %v203 = vld [vmem:[#allocation8 + $0x140] sm:$0xff]
    %v204 = vld [vmem:[#allocation8 + $0x148] sm:$0xff]
    %v205 = vld [vmem:[#allocation8 + $0x150] sm:$0xff]
    %v206 = vld [vmem:[#allocation8 + $0x158] sm:$0xff]
    %v207 = vld [vmem:[#allocation8 + $0x160] sm:$0xff]
    %v208 = vld [vmem:[#allocation8 + $0x168] sm:$0xff]
    %v209 = vld [vmem:[#allocation8 + $0x170] sm:$0xff]
    %v210 = vld [vmem:[#allocation8 + $0x178] sm:$0xff]
    %v211 = vld [vmem:[#allocation8 + $0x180] sm:$0xff]
    %v212 = vld [vmem:[#allocation8 + $0x188] sm:$0xff]
    %v213 = vld [vmem:[#allocation8 + $0x190] sm:$0xff]
    %v214 = vld [vmem:[#allocation8 + $0x198] sm:$0xff]
    %v215 = vld [vmem:[#allocation8 + $0x1a0] sm:$0xff]
    %v216 = vld [vmem:[#allocation8 + $0x1a8] sm:$0xff]
    %v217 = vld [vmem:[#allocation8 + $0x1b0] sm:$0xff]
    %v218 = vld [vmem:[#allocation8 + $0x1b8] sm:$0xff]
    %v219 = vld [vmem:[#allocation8 + $0x1c0] sm:$0xff]
    %v220 = vld [vmem:[#allocation8 + $0x1c8] sm:$0xff]
    %v221 = vld [vmem:[#allocation8 + $0x1d0] sm:$0xff]
    %v222 = vld [vmem:[#allocation8 + $0x1d8] sm:$0xff]
    %v223 = vld [vmem:[#allocation8 + $0x1e0] sm:$0xff]
    %v224 = vld [vmem:[#allocation8 + $0x1e8] sm:$0xff]
    %v225 = vld [vmem:[#allocation8 + $0x1f0] sm:$0xff]
    %v226 = vld [vmem:[#allocation8 + $0x1f8] sm:$0xff]
    %v227 = vld [vmem:[#allocation8 + $0x200] sm:$0xff]
    %v228 = vld [vmem:[#allocation8 + $0x208] sm:$0xff]
    %v229 = vld [vmem:[#allocation8 + $0x210] sm:$0xff]
    %v230 = vld [vmem:[#allocation8 + $0x218] sm:$0xff]
    %v231 = vld [vmem:[#allocation8 + $0x220] sm:$0xff]
    %v232 = vld [vmem:[#allocation8 + $0x228] sm:$0xff]
    %v233 = vld [vmem:[#allocation8 + $0x230] sm:$0xff]
    %v234 = vld [vmem:[#allocation8 + $0x238] sm:$0xff]
    %v235 = vld [vmem:[#allocation8 + $0x240] sm:$0xff]
    %v236 = vld [vmem:[#allocation8 + $0x248] sm:$0xff]
    %v237 = vld [vmem:[#allocation8 + $0x250] sm:$0xff]
    %v238 = vld [vmem:[#allocation8 + $0x258] sm:$0xff]
    %v239 = vld [vmem:[#allocation8 + $0x260] sm:$0xff]
    %v240 = vld [vmem:[#allocation8 + $0x268] sm:$0xff]
    %v241 = vld [vmem:[#allocation8 + $0x270] sm:$0xff]
    %v242 = vld [vmem:[#allocation8 + $0x278] sm:$0xff]
    %v243 = vld [vmem:[#allocation8 + $0x280] sm:$0xff]
    %v244 = vld [vmem:[#allocation8 + $0x288] sm:$0xff]
    %v245 = vld [vmem:[#allocation8 + $0x290] sm:$0xff]
    %v246 = vld [vmem:[#allocation8 + $0x298] sm:$0xff]
    %v247 = vld [vmem:[#allocation8 + $0x2a0] sm:$0xff]
    %v248 = vld [vmem:[#allocation8 + $0x2a8] sm:$0xff]
    %v249 = vld [vmem:[#allocation8 + $0x2b0] sm:$0xff]
    %v250 = vld [vmem:[#allocation8 + $0x2b8] sm:$0xff]
    %v251 = vld [vmem:[#allocation8 + $0x2c0] sm:$0xff]
    %v252 = vld [vmem:[#allocation8 + $0x2c8] sm:$0xff]
    %v253 = vld [vmem:[#allocation8 + $0x2d0] sm:$0xff]
    %v254 = vld [vmem:[#allocation8 + $0x2d8] sm:$0xff]
    %v255 = vld [vmem:[#allocation8 + $0x2e0] sm:$0xff]
    %v256 = vld [vmem:[#allocation8 + $0x2e8] sm:$0xff]
    %v257 = vld [vmem:[#allocation8 + $0x2f0] sm:$0xff]
    %v258 = vld [vmem:[#allocation8 + $0x2f8] sm:$0xff]
    %v259 = vld [vmem:[#allocation8 + $0x300] sm:$0xff]
    %v260 = vld [vmem:[#allocation8 + $0x308] sm:$0xff]
    %v261 = vld [vmem:[#allocation8 + $0x310] sm:$0xff]
    %v262 = vld [vmem:[#allocation8 + $0x318] sm:$0xff]
    %v263 = vld [vmem:[#allocation8 + $0x320] sm:$0xff]
    %v264 = vld [vmem:[#allocation8 + $0x328] sm:$0xff]
    %v265 = vld [vmem:[#allocation8 + $0x330] sm:$0xff]
    %v266 = vld [vmem:[#allocation8 + $0x338] sm:$0xff]
    %v267 = vld [vmem:[#allocation8 + $0x340] sm:$0xff]
    %v268 = vld [vmem:[#allocation8 + $0x348] sm:$0xff]
    %v269 = vld [vmem:[#allocation8 + $0x350] sm:$0xff]
    %v270 = vld [vmem:[#allocation8 + $0x358] sm:$0xff]
    %v271 = vld [vmem:[#allocation8 + $0x360] sm:$0xff]
    %v272 = vld [vmem:[#allocation8 + $0x368] sm:$0xff]
    %v273 = vld [vmem:[#allocation8 + $0x370] sm:$0xff]
    %v274 = vld [vmem:[#allocation8 + $0x378] sm:$0xff]
    %v275 = vld [vmem:[#allocation8 + $0x380] sm:$0xff]
    %v276 = vld [vmem:[#allocation8 + $0x388] sm:$0xff]
    %v277 = vld [vmem:[#allocation8 + $0x390] sm:$0xff]
    %v278 = vld [vmem:[#allocation8 + $0x398] sm:$0xff]
    %v279 = vld [vmem:[#allocation8 + $0x3a0] sm:$0xff]
    %v280 = vld [vmem:[#allocation8 + $0x3a8] sm:$0xff]
    %v281 = vld [vmem:[#allocation8 + $0x3b0] sm:$0xff]
    %v282 = vld [vmem:[#allocation8 + $0x3b8] sm:$0xff]
    %v283 = vld [vmem:[#allocation8 + $0x3c0] sm:$0xff]
    %v284 = vld [vmem:[#allocation8 + $0x3c8] sm:$0xff]
    %v285 = vld [vmem:[#allocation8 + $0x3d0] sm:$0xff]
    %v286 = vld [vmem:[#allocation8 + $0x3d8] sm:$0xff]
    %v287 = vld [vmem:[#allocation8 + $0x3e0] sm:$0xff]
    %v288 = vld [vmem:[#allocation8 + $0x3e8] sm:$0xff]
    %v289 = vld [vmem:[#allocation8 + $0x3f0] sm:$0xff]
    %v290 = vld [vmem:[#allocation8 + $0x3f8] sm:$0xff]
    %v291 = vld [vmem:[#allocation8 + $0x400] sm:$0xff]
    %v292 = vld [vmem:[#allocation8 + $0x408] sm:$0xff]
    %v293 = vld [vmem:[#allocation8 + $0x410] sm:$0xff]
    %v294 = vld [vmem:[#allocation8 + $0x418] sm:$0xff]
    %v295 = vld [vmem:[#allocation8 + $0x420] sm:$0xff]
    %v296 = vld [vmem:[#allocation8 + $0x428] sm:$0xff]
    %v297 = vld [vmem:[#allocation8 + $0x430] sm:$0xff]
    %v298 = vld [vmem:[#allocation8 + $0x438] sm:$0xff]
    %v299 = vld [vmem:[#allocation8 + $0x440] sm:$0xff]
    %v300 = vld [vmem:[#allocation8 + $0x448] sm:$0xff]
    %v301 = vld [vmem:[#allocation8 + $0x450] sm:$0xff]
    %v302 = vld [vmem:[#allocation8 + $0x458] sm:$0xff]
    %v303 = vld [vmem:[#allocation8 + $0x460] sm:$0x1]
    %v304 = vld [vmem:[#allocation8 + $0x468] sm:$0x1]
    %v305 = vld [vmem:[#allocation8 + $0x470] sm:$0x1]
    %v306 = vld [vmem:[#allocation8 + $0x478] sm:$0x1]
    %v307 = vld [vmem:[#allocation8 + $0x480] sm:$0x1]
    %v308 = vld [vmem:[#allocation10] sm:$0x1f]
    %v310 = vperm.slane %v308, 0
    %v311 = vperm.slane %v308, 1
    %v312 = vperm.slane %v308, 2
    %v313 = vperm.slane %v308, 3
    %v314 = vperm.slane %v308, 4
    %vm320 = vcmask 793600
    %v322 = vsel %vm320, %v162, 0
    %vm324 = vcmask 1040384
    %v326 = vsel %vm324, %v303, 0
    %v329 = vsel %vm324, %v304, 0
    %v332 = vsel %vm324, %v305, 0
    %v335 = vsel %vm324, %v306, 0
    %v338 = vsel %vm324, %v307, 0
    %340 = vmatpush.msra.mxu0 %v238
    %341 = vmatpush.msra.mxu0 %v233
    %342 = vmatpush.msra.mxu0 %v228
    %343 = vmatpush.msra.mxu0 %v223
    %344 = vmatpush.msra.mxu0 %v218
    %345 = vmatpush.msra.mxu0 %v213
    %346 = vmatpush.msra.mxu0 %v208
    %347 = vmatpush.msra.mxu0 %v203
    %348 = vmatpush.msra.mxu0 %v198
    %349 = vmatpush.msra.mxu0 %v193
    %350 = vmatpush.msra.mxu0 %v188
    %351 = vmatpush.msra.mxu0 %v183
    %352 = vmatpush.msra.mxu0 %v178
    %353 = vmatpush.msra.mxu0 %v173
    %354 = vmatpush.msra.mxu0 %v168
    %355 = vmatpush.msra.mxu0 %v163
    %356 = vmatmul.f32.gmra.mxu0 %v161
    %v357 = vpop.f32.mrf.mxu0
    %v358 = vadd.f32 %v310, %v357
    %359 = vdwg.mxu0
    %360 = vmatpush.msra.mxu0 0.0
    %361 = vmatpush.msra.mxu0 0.0
    %362 = vmatpush.msra.mxu0 0.0
    %363 = vmatpush.msra.mxu0 %v326
    %364 = vmatpush.msra.mxu0 %v298
    %365 = vmatpush.msra.mxu0 %v293
    %366 = vmatpush.msra.mxu0 %v288
    %367 = vmatpush.msra.mxu0 %v283
    %368 = vmatpush.msra.mxu0 %v278
    %369 = vmatpush.msra.mxu0 %v273
    %370 = vmatpush.msra.mxu0 %v268
    %371 = vmatpush.msra.mxu0 %v263
    %372 = vmatpush.msra.mxu0 %v258
    %373 = vmatpush.msra.mxu0 %v253
    %374 = vmatpush.msra.mxu0 %v248
    %375 = vmatpush.msra.mxu0 %v243
    %376 = vmatmul.f32.gmra.mxu0 %v322
    %v377 = vpop.f32.mrf.mxu0
    %v378 = vadd.f32 %v358, %v377
    %379 = vdwg.mxu0
    %380 = vmatpush.msra.mxu0 %v239
    %381 = vmatpush.msra.mxu0 %v234
    %382 = vmatpush.msra.mxu0 %v229
    %383 = vmatpush.msra.mxu0 %v224
    %384 = vmatpush.msra.mxu0 %v219
    %385 = vmatpush.msra.mxu0 %v214
    %386 = vmatpush.msra.mxu0 %v209
    %387 = vmatpush.msra.mxu0 %v204
    %388 = vmatpush.msra.mxu0 %v199
    %389 = vmatpush.msra.mxu0 %v194
    %390 = vmatpush.msra.mxu0 %v189
    %391 = vmatpush.msra.mxu0 %v184
    %392 = vmatpush.msra.mxu0 %v179
    %393 = vmatpush.msra.mxu0 %v174
    %394 = vmatpush.msra.mxu0 %v169
    %395 = vmatpush.msra.mxu0 %v164
    %396 = vmatmul.f32.gmra.mxu0 %v161
    %v397 = vpop.f32.mrf.mxu0
    %v398 = vadd.f32 %v311, %v397
    %399 = vdwg.mxu0
    %400 = vmatpush.msra.mxu0 0.0
    %401 = vmatpush.msra.mxu0 0.0
    %402 = vmatpush.msra.mxu0 0.0
    %403 = vmatpush.msra.mxu0 %v329
    %404 = vmatpush.msra.mxu0 %v299
    %405 = vmatpush.msra.mxu0 %v294
    %406 = vmatpush.msra.mxu0 %v289
    %407 = vmatpush.msra.mxu0 %v284
    %408 = vmatpush.msra.mxu0 %v279
    %409 = vmatpush.msra.mxu0 %v274
    %410 = vmatpush.msra.mxu0 %v269
    %411 = vmatpush.msra.mxu0 %v264
    %412 = vmatpush.msra.mxu0 %v259
    %413 = vmatpush.msra.mxu0 %v254
    %414 = vmatpush.msra.mxu0 %v249
    %415 = vmatpush.msra.mxu0 %v244
    %416 = vmatmul.f32.gmra.mxu0 %v322
    %v417 = vpop.f32.mrf.mxu0
    %v418 = vadd.f32 %v398, %v417
    %419 = vdwg.mxu0
    %420 = vmatpush.msra.mxu0 %v240
    %421 = vmatpush.msra.mxu0 %v235
    %422 = vmatpush.msra.mxu0 %v230
    %423 = vmatpush.msra.mxu0 %v225
    %424 = vmatpush.msra.mxu0 %v220
    %425 = vmatpush.msra.mxu0 %v215
    %426 = vmatpush.msra.mxu0 %v210
    %427 = vmatpush.msra.mxu0 %v205
    %428 = vmatpush.msra.mxu0 %v200
    %429 = vmatpush.msra.mxu0 %v195
    %430 = vmatpush.msra.mxu0 %v190
    %431 = vmatpush.msra.mxu0 %v185
    %432 = vmatpush.msra.mxu0 %v180
    %433 = vmatpush.msra.mxu0 %v175
    %434 = vmatpush.msra.mxu0 %v170
    %435 = vmatpush.msra.mxu0 %v165
    %436 = vmatmul.f32.gmra.mxu0 %v161
    %v437 = vpop.f32.mrf.mxu0
    %v438 = vadd.f32 %v312, %v437
    %439 = vdwg.mxu0
    %440 = vmatpush.msra.mxu0 0.0
    %441 = vmatpush.msra.mxu0 0.0
    %442 = vmatpush.msra.mxu0 0.0
    %443 = vmatpush.msra.mxu0 %v332
    %444 = vmatpush.msra.mxu0 %v300
    %445 = vmatpush.msra.mxu0 %v295
    %446 = vmatpush.msra.mxu0 %v290
    %447 = vmatpush.msra.mxu0 %v285
    %448 = vmatpush.msra.mxu0 %v280
    %449 = vmatpush.msra.mxu0 %v275
    %450 = vmatpush.msra.mxu0 %v270
    %451 = vmatpush.msra.mxu0 %v265
    %452 = vmatpush.msra.mxu0 %v260
    %453 = vmatpush.msra.mxu0 %v255
    %454 = vmatpush.msra.mxu0 %v250
    %455 = vmatpush.msra.mxu0 %v245
    %456 = vmatmul.f32.gmra.mxu0 %v322
    %v457 = vpop.f32.mrf.mxu0
    %v458 = vadd.f32 %v438, %v457
    %459 = vdwg.mxu0
    %460 = vmatpush.msra.mxu0 %v241
    %461 = vmatpush.msra.mxu0 %v236
    %462 = vmatpush.msra.mxu0 %v231
    %463 = vmatpush.msra.mxu0 %v226
    %464 = vmatpush.msra.mxu0 %v221
    %465 = vmatpush.msra.mxu0 %v216
    %466 = vmatpush.msra.mxu0 %v211
    %467 = vmatpush.msra.mxu0 %v206
    %468 = vmatpush.msra.mxu0 %v201
    %469 = vmatpush.msra.mxu0 %v196
    %470 = vmatpush.msra.mxu0 %v191
    %471 = vmatpush.msra.mxu0 %v186
    %472 = vmatpush.msra.mxu0 %v181
    %473 = vmatpush.msra.mxu0 %v176
    %474 = vmatpush.msra.mxu0 %v171
    %475 = vmatpush.msra.mxu0 %v166
    %476 = vmatmul.f32.gmra.mxu0 %v161
    %v477 = vpop.f32.mrf.mxu0
    %v478 = vadd.f32 %v313, %v477
    %479 = vdwg.mxu0
    %480 = vmatpush.msra.mxu0 0.0
    %481 = vmatpush.msra.mxu0 0.0
    %482 = vmatpush.msra.mxu0 0.0
    %483 = vmatpush.msra.mxu0 %v335
    %484 = vmatpush.msra.mxu0 %v301
    %485 = vmatpush.msra.mxu0 %v296
    %486 = vmatpush.msra.mxu0 %v291
    %487 = vmatpush.msra.mxu0 %v286
    %488 = vmatpush.msra.mxu0 %v281
    %489 = vmatpush.msra.mxu0 %v276
    %490 = vmatpush.msra.mxu0 %v271
    %491 = vmatpush.msra.mxu0 %v266
    %492 = vmatpush.msra.mxu0 %v261
    %493 = vmatpush.msra.mxu0 %v256
    %494 = vmatpush.msra.mxu0 %v251
    %495 = vmatpush.msra.mxu0 %v246
    %496 = vmatmul.f32.gmra.mxu0 %v322
    %v497 = vpop.f32.mrf.mxu0
    %v498 = vadd.f32 %v478, %v497
    %499 = vdwg.mxu0
    %500 = vmatpush.msra.mxu0 %v242
    %501 = vmatpush.msra.mxu0 %v237
    %502 = vmatpush.msra.mxu0 %v232
    %503 = vmatpush.msra.mxu0 %v227
    %504 = vmatpush.msra.mxu0 %v222
    %505 = vmatpush.msra.mxu0 %v217
    %506 = vmatpush.msra.mxu0 %v212
    %507 = vmatpush.msra.mxu0 %v207
    %508 = vmatpush.msra.mxu0 %v202
    %509 = vmatpush.msra.mxu0 %v197
    %510 = vmatpush.msra.mxu0 %v192
    %511 = vmatpush.msra.mxu0 %v187
    %512 = vmatpush.msra.mxu0 %v182
    %513 = vmatpush.msra.mxu0 %v177
    %514 = vmatpush.msra.mxu0 %v172
    %515 = vmatpush.msra.mxu0 %v167
    %516 = vmatmul.f32.gmra.mxu0 %v161
    %v517 = vpop.f32.mrf.mxu0
    %v518 = vadd.f32 %v314, %v517
    %519 = vdwg.mxu0
    %520 = vmatpush.msra.mxu0 0.0
    %521 = vmatpush.msra.mxu0 0.0
    %522 = vmatpush.msra.mxu0 0.0
    %523 = vmatpush.msra.mxu0 %v338
    %524 = vmatpush.msra.mxu0 %v302
    %525 = vmatpush.msra.mxu0 %v297
    %526 = vmatpush.msra.mxu0 %v292
    %527 = vmatpush.msra.mxu0 %v287
    %528 = vmatpush.msra.mxu0 %v282
    %529 = vmatpush.msra.mxu0 %v277
    %530 = vmatpush.msra.mxu0 %v272
    %531 = vmatpush.msra.mxu0 %v267
    %532 = vmatpush.msra.mxu0 %v262
    %533 = vmatpush.msra.mxu0 %v257
    %534 = vmatpush.msra.mxu0 %v252
    %535 = vmatpush.msra.mxu0 %v247
    %536 = vmatmul.f32.gmra.mxu0 %v322
    %v537 = vpop.f32.mrf.mxu0
    %v538 = vadd.f32 %v518, %v537
    %539 = vdwg.mxu0
    %v540 = vmax.f32 %v378, 0.0
    %v541 = vmax.f32 %v418, 0.0
    %v542 = vmax.f32 %v458, 0.0
    %v543 = vmax.f32 %v498, 0.0
    %v544 = vmax.f32 %v538, 0.0
    %vm545 = vcmask 924672
    %v546 = vsel %vm545, %v544, -inf
    %v547 = vmax.f32 %v540, %v546
    %v548 = vmax.f32 %v547, %v541
    %v549 = vmax.f32 %v542, %v543
    %v550 = vmax.f32 %v548, %v549
    %551 = vmax.xlane.f32.xlu0 %v550
    %v552 = vpop.xlane.xlu0 %551
    %v553 = vsub.f32 %v540, %v552
    %v554 = vsub.f32 %v541, %v552
    %v555 = vsub.f32 %v542, %v552
    %v556 = vsub.f32 %v543, %v552
    %v557 = vsub.f32 %v544, %v552
    %v558 = vmul.f32 %v553, 1.442695
    %v559 = vpow.pop %v558
    %v560 = vmul.f32 %v554, 1.442695
    %v561 = vpow.pop %v560
    %v562 = vmul.f32 %v555, 1.442695
    %v563 = vpow.pop %v562
    %v564 = vmul.f32 %v556, 1.442695
    %v565 = vpow.pop %v564
    %v566 = vmul.f32 %v557, 1.442695
    %v567 = vpow.pop %v566
    %569 = vrot.lane.b32.xlu0 %v559, 103
    %v570 = vpop.permute.xlu0 %569
    %572 = vrot.lane.b32.xlu0 %v559, 78
    %v573 = vpop.permute.xlu0 %572
    %575 = vrot.lane.b32.xlu0 %v559, 53
    %v576 = vpop.permute.xlu0 %575
    %578 = vrot.lane.b32.xlu0 %v559, 28
    %v579 = vpop.permute.xlu0 %578
    %582 = vrot.lane.b32.xlu0 %v559, 3
    %v583 = vpop.permute.xlu0 %582
    %584 = vrot.lane.b32.xlu0 %v561, 3
    %v585 = vpop.permute.xlu0 %584
    %vm586 = vcmask 23552
    %v587 = vsel %vm586, %v583, %v585
    %589 = vrot.lane.b32.xlu0 %v561, 106
    %v590 = vpop.permute.xlu0 %589
    %592 = vrot.lane.b32.xlu0 %v561, 81
    %v593 = vpop.permute.xlu0 %592
    %595 = vrot.lane.b32.xlu0 %v561, 56
    %v596 = vpop.permute.xlu0 %595
    %598 = vrot.lane.b32.xlu0 %v561, 31
    %v599 = vpop.permute.xlu0 %598
    %602 = vrot.lane.b32.xlu0 %v561, 6
    %v603 = vpop.permute.xlu0 %602
    %604 = vrot.lane.b32.xlu0 %v563, 6
    %v605 = vpop.permute.xlu0 %604
    %vm606 = vcmask 48128
    %v607 = vsel %vm606, %v603, %v605
    %609 = vrot.lane.b32.xlu0 %v563, 109
    %v610 = vpop.permute.xlu0 %609
    %612 = vrot.lane.b32.xlu0 %v563, 84
    %v613 = vpop.permute.xlu0 %612
    %615 = vrot.lane.b32.xlu0 %v563, 59
    %v616 = vpop.permute.xlu0 %615
    %618 = vrot.lane.b32.xlu0 %v563, 34
    %v619 = vpop.permute.xlu0 %618
    %622 = vrot.lane.b32.xlu0 %v563, 9
    %v623 = vpop.permute.xlu0 %622
    %624 = vrot.lane.b32.xlu0 %v565, 9
    %v625 = vpop.permute.xlu0 %624
    %vm626 = vcmask 72704
    %v627 = vsel %vm626, %v623, %v625
    %629 = vrot.lane.b32.xlu0 %v565, 112
    %v630 = vpop.permute.xlu0 %629
    %632 = vrot.lane.b32.xlu0 %v565, 87
    %v633 = vpop.permute.xlu0 %632
    %635 = vrot.lane.b32.xlu0 %v565, 62
    %v636 = vpop.permute.xlu0 %635
    %638 = vrot.lane.b32.xlu0 %v565, 37
    %v639 = vpop.permute.xlu0 %638
    %642 = vrot.lane.b32.xlu0 %v565, 12
    %v643 = vpop.permute.xlu0 %642
    %644 = vrot.lane.b32.xlu0 %v567, 12
    %v645 = vpop.permute.xlu0 %644
    %vm646 = vcmask 97280
    %v647 = vsel %vm646, %v643, %v645
    %649 = vrot.lane.b32.xlu0 %v567, 115
    %v650 = vpop.permute.xlu0 %649
    %652 = vrot.lane.b32.xlu0 %v567, 90
    %v653 = vpop.permute.xlu0 %652
    %655 = vrot.lane.b32.xlu0 %v567, 65
    %v656 = vpop.permute.xlu0 %655
    %658 = vrot.lane.b32.xlu0 %v567, 40
    %v659 = vpop.permute.xlu0 %658
    %v661 = vrot.slane %v573, 4
    %vm662 = vcmask 1047556
    %v663 = vsel %vm662, %v661, %v559
    %v664 = vrot.slane %v559, 4
    %v665 = vsel %vm662, %v573, %v664
    %v667 = vunpack.c.l.s4 1983009808
    %v668 = vunpack.c.0.s8 %v667
    %v669 = vperm.slane %v663, %v668
    %v671 = vunpack.c.l.s4 1983009808
    %v672 = vunpack.c.0.s8 %v671
    %v673 = vperm.slane %v665, %v672
    %v674 = vrot.slane %v576, 4
    %v675 = vsel %vm662, %v674, %v570
    %v676 = vrot.slane %v570, 4
    %v677 = vsel %vm662, %v576, %v676
    %v679 = vunpack.c.l.s4 1983009808
    %v680 = vunpack.c.0.s8 %v679
    %v681 = vperm.slane %v675, %v680
    %v683 = vunpack.c.l.s4 1983009808
    %v684 = vunpack.c.0.s8 %v683
    %v685 = vperm.slane %v677, %v684
    %v686 = vrot.slane %v590, 4
    %v687 = vsel %vm662, %v686, %v579
    %v688 = vrot.slane %v579, 4
    %v689 = vsel %vm662, %v590, %v688
    %v691 = vunpack.c.l.s4 1983009808
    %v692 = vunpack.c.0.s8 %v691
    %v693 = vperm.slane %v687, %v692
    %v695 = vunpack.c.l.s4 1983009808
    %v696 = vunpack.c.0.s8 %v695
    %v697 = vperm.slane %v689, %v696
    %v698 = vrot.slane %v593, 4
    %v699 = vsel %vm662, %v698, %v587
    %v700 = vrot.slane %v587, 4
    %v701 = vsel %vm662, %v593, %v700
    %v703 = vunpack.c.l.s4 1983009808
    %v704 = vunpack.c.0.s8 %v703
    %v705 = vperm.slane %v699, %v704
    %v707 = vunpack.c.l.s4 1983009808
    %v708 = vunpack.c.0.s8 %v707
    %v709 = vperm.slane %v701, %v708
    %v710 = vrot.slane %v681, 4
    %v711 = vsel %vm662, %v710, %v669
    %v712 = vrot.slane %v669, 4
    %v713 = vsel %vm662, %v681, %v712
    %v715 = vunpack.c.l.s4 1934713408
    %v716 = vunpack.c.0.s8 %v715
    %v717 = vperm.slane %v711, %v716
    %v719 = vunpack.c.l.s4 1934713408
    %v720 = vunpack.c.0.s8 %v719
    %v721 = vperm.slane %v713, %v720
    %v722 = vrot.slane %v685, 4
    %v723 = vsel %vm662, %v722, %v673
    %v724 = vrot.slane %v673, 4
    %v725 = vsel %vm662, %v685, %v724
    %v727 = vunpack.c.l.s4 1934713408
    %v728 = vunpack.c.0.s8 %v727
    %v729 = vperm.slane %v723, %v728
    %v731 = vunpack.c.l.s4 1934713408
    %v732 = vunpack.c.0.s8 %v731
    %v733 = vperm.slane %v725, %v732
    %v734 = vrot.slane %v705, 4
    %v735 = vsel %vm662, %v734, %v693
    %v736 = vrot.slane %v693, 4
    %v737 = vsel %vm662, %v705, %v736
    %v739 = vunpack.c.l.s4 1934713408
    %v740 = vunpack.c.0.s8 %v739
    %v741 = vperm.slane %v735, %v740
    %v743 = vunpack.c.l.s4 1934713408
    %v744 = vunpack.c.0.s8 %v743
    %v745 = vperm.slane %v737, %v744
    %v746 = vrot.slane %v709, 4
    %v747 = vsel %vm662, %v746, %v697
    %v748 = vrot.slane %v697, 4
    %v749 = vsel %vm662, %v709, %v748
    %v751 = vunpack.c.l.s4 1934713408
    %v752 = vunpack.c.0.s8 %v751
    %v753 = vperm.slane %v747, %v752
    %v755 = vunpack.c.l.s4 1934713408
    %v756 = vunpack.c.0.s8 %v755
    %v757 = vperm.slane %v749, %v756
    %v758 = vrot.slane %v741, 4
    %v759 = vsel %vm662, %v758, %v717
    %v760 = vrot.slane %v717, 4
    %v761 = vsel %vm662, %v741, %v760
    %v762 = vrot.slane %v745, 4
    %v763 = vsel %vm662, %v762, %v721
    %v764 = vrot.slane %v721, 4
    %v765 = vsel %vm662, %v745, %v764
    %v766 = vrot.slane %v753, 4
    %v767 = vsel %vm662, %v766, %v729
    %v768 = vrot.slane %v729, 4
    %v769 = vsel %vm662, %v753, %v768
    %v770 = vrot.slane %v757, 4
    %v771 = vsel %vm662, %v770, %v733
    %v772 = vrot.slane %v733, 4
    %v773 = vsel %vm662, %v757, %v772
    %v774 = vrot.slane %v607, 4
    %v775 = vsel %vm662, %v774, %v596
    %v776 = vrot.slane %v596, 4
    %v777 = vsel %vm662, %v607, %v776
    %v779 = vunpack.c.l.s4 1983009808
    %v780 = vunpack.c.0.s8 %v779
    %v781 = vperm.slane %v775, %v780
    %v783 = vunpack.c.l.s4 1983009808
    %v784 = vunpack.c.0.s8 %v783
    %v785 = vperm.slane %v777, %v784
    %v786 = vrot.slane %v610, 4
    %v787 = vsel %vm662, %v786, %v599
    %v788 = vrot.slane %v599, 4
    %v789 = vsel %vm662, %v610, %v788
    %v791 = vunpack.c.l.s4 1983009808
    %v792 = vunpack.c.0.s8 %v791
    %v793 = vperm.slane %v787, %v792
    %v795 = vunpack.c.l.s4 1983009808
    %v796 = vunpack.c.0.s8 %v795
    %v797 = vperm.slane %v789, %v796
    %v798 = vrot.slane %v619, 4
    %v799 = vsel %vm662, %v798, %v613
    %v800 = vrot.slane %v613, 4
    %v801 = vsel %vm662, %v619, %v800
    %v803 = vunpack.c.l.s4 1983009808
    %v804 = vunpack.c.0.s8 %v803
    %v805 = vperm.slane %v799, %v804
    %v807 = vunpack.c.l.s4 1983009808
    %v808 = vunpack.c.0.s8 %v807
    %v809 = vperm.slane %v801, %v808
    %v810 = vrot.slane %v627, 4
    %v811 = vsel %vm662, %v810, %v616
    %v812 = vrot.slane %v616, 4
    %v813 = vsel %vm662, %v627, %v812
    %v815 = vunpack.c.l.s4 1983009808
    %v816 = vunpack.c.0.s8 %v815
    %v817 = vperm.slane %v811, %v816
    %v819 = vunpack.c.l.s4 1983009808
    %v820 = vunpack.c.0.s8 %v819
    %v821 = vperm.slane %v813, %v820
    %v822 = vrot.slane %v793, 4
    %v823 = vsel %vm662, %v822, %v781
    %v824 = vrot.slane %v781, 4
    %v825 = vsel %vm662, %v793, %v824
    %v827 = vunpack.c.l.s4 1934713408
    %v828 = vunpack.c.0.s8 %v827
    %v829 = vperm.slane %v823, %v828
    %v831 = vunpack.c.l.s4 1934713408
    %v832 = vunpack.c.0.s8 %v831
    %v833 = vperm.slane %v825, %v832
    %v834 = vrot.slane %v797, 4
    %v835 = vsel %vm662, %v834, %v785
    %v836 = vrot.slane %v785, 4
    %v837 = vsel %vm662, %v797, %v836
    %v839 = vunpack.c.l.s4 1934713408
    %v840 = vunpack.c.0.s8 %v839
    %v841 = vperm.slane %v835, %v840
    %v843 = vunpack.c.l.s4 1934713408
    %v844 = vunpack.c.0.s8 %v843
    %v845 = vperm.slane %v837, %v844
    %v846 = vrot.slane %v817, 4
    %v847 = vsel %vm662, %v846, %v805
    %v848 = vrot.slane %v805, 4
    %v849 = vsel %vm662, %v817, %v848
    %v851 = vunpack.c.l.s4 1934713408
    %v852 = vunpack.c.0.s8 %v851
    %v853 = vperm.slane %v847, %v852
    %v855 = vunpack.c.l.s4 1934713408
    %v856 = vunpack.c.0.s8 %v855
    %v857 = vperm.slane %v849, %v856
    %v858 = vrot.slane %v821, 4
    %v859 = vsel %vm662, %v858, %v809
    %v860 = vrot.slane %v809, 4
    %v861 = vsel %vm662, %v821, %v860
    %v863 = vunpack.c.l.s4 1934713408
    %v864 = vunpack.c.0.s8 %v863
    %v865 = vperm.slane %v859, %v864
    %v867 = vunpack.c.l.s4 1934713408
    %v868 = vunpack.c.0.s8 %v867
    %v869 = vperm.slane %v861, %v868
    %v870 = vrot.slane %v853, 4
    %v871 = vsel %vm662, %v870, %v829
    %v872 = vrot.slane %v829, 4
    %v873 = vsel %vm662, %v853, %v872
    %v874 = vrot.slane %v857, 4
    %v875 = vsel %vm662, %v874, %v833
    %v876 = vrot.slane %v833, 4
    %v877 = vsel %vm662, %v857, %v876
    %v878 = vrot.slane %v865, 4
    %v879 = vsel %vm662, %v878, %v841
    %v880 = vrot.slane %v841, 4
    %v881 = vsel %vm662, %v865, %v880
    %v882 = vrot.slane %v869, 4
    %v883 = vsel %vm662, %v882, %v845
    %v884 = vrot.slane %v845, 4
    %v885 = vsel %vm662, %v869, %v884
    %v886 = vrot.slane %v636, 4
    %v887 = vsel %vm662, %v886, %v630
    %v888 = vrot.slane %v630, 4
    %v889 = vsel %vm662, %v636, %v888
    %v891 = vunpack.c.l.s4 1983009808
    %v892 = vunpack.c.0.s8 %v891
    %v893 = vperm.slane %v887, %v892
    %v895 = vunpack.c.l.s4 1983009808
    %v896 = vunpack.c.0.s8 %v895
    %v897 = vperm.slane %v889, %v896
    %v898 = vrot.slane %v639, 4
    %v899 = vsel %vm662, %v898, %v633
    %v900 = vrot.slane %v633, 4
    %v901 = vsel %vm662, %v639, %v900
    %v903 = vunpack.c.l.s4 1983009808
    %v904 = vunpack.c.0.s8 %v903
    %v905 = vperm.slane %v899, %v904
    %v907 = vunpack.c.l.s4 1983009808
    %v908 = vunpack.c.0.s8 %v907
    %v909 = vperm.slane %v901, %v908
    %v910 = vrot.slane %v653, 4
    %v911 = vsel %vm662, %v910, %v647
    %v912 = vrot.slane %v647, 4
    %v913 = vsel %vm662, %v653, %v912
    %v915 = vunpack.c.l.s4 1983009808
    %v916 = vunpack.c.0.s8 %v915
    %v917 = vperm.slane %v911, %v916
    %v919 = vunpack.c.l.s4 1983009808
    %v920 = vunpack.c.0.s8 %v919
    %v921 = vperm.slane %v913, %v920
    %v922 = vrot.slane %v656, 4
    %v923 = vsel %vm662, %v922, %v650
    %v924 = vrot.slane %v650, 4
    %v925 = vsel %vm662, %v656, %v924
    %v927 = vunpack.c.l.s4 1983009808
    %v928 = vunpack.c.0.s8 %v927
    %v929 = vperm.slane %v923, %v928
    %v931 = vunpack.c.l.s4 1983009808
    %v932 = vunpack.c.0.s8 %v931
    %v933 = vperm.slane %v925, %v932
    %v934 = vrot.slane %v905, 4
    %v935 = vsel %vm662, %v934, %v893
    %v936 = vrot.slane %v893, 4
    %v937 = vsel %vm662, %v905, %v936
    %v939 = vunpack.c.l.s4 1934713408
    %v940 = vunpack.c.0.s8 %v939
    %v941 = vperm.slane %v935, %v940
    %v943 = vunpack.c.l.s4 1934713408
    %v944 = vunpack.c.0.s8 %v943
    %v945 = vperm.slane %v937, %v944
    %v946 = vrot.slane %v909, 4
    %v947 = vsel %vm662, %v946, %v897
    %v948 = vrot.slane %v897, 4
    %v949 = vsel %vm662, %v909, %v948
    %v951 = vunpack.c.l.s4 1934713408
    %v952 = vunpack.c.0.s8 %v951
    %v953 = vperm.slane %v947, %v952
    %v955 = vunpack.c.l.s4 1934713408
    %v956 = vunpack.c.0.s8 %v955
    %v957 = vperm.slane %v949, %v956
    %v958 = vrot.slane %v929, 4
    %v959 = vsel %vm662, %v958, %v917
    %v960 = vrot.slane %v917, 4
    %v961 = vsel %vm662, %v929, %v960
    %v963 = vunpack.c.l.s4 1934713408
    %v964 = vunpack.c.0.s8 %v963
    %v965 = vperm.slane %v959, %v964
    %v967 = vunpack.c.l.s4 1934713408
    %v968 = vunpack.c.0.s8 %v967
    %v969 = vperm.slane %v961, %v968
    %v970 = vrot.slane %v933, 4
    %v971 = vsel %vm662, %v970, %v921
    %v972 = vrot.slane %v921, 4
    %v973 = vsel %vm662, %v933, %v972
    %v975 = vunpack.c.l.s4 1934713408
    %v976 = vunpack.c.0.s8 %v975
    %v977 = vperm.slane %v971, %v976
    %v979 = vunpack.c.l.s4 1934713408
    %v980 = vunpack.c.0.s8 %v979
    %v981 = vperm.slane %v973, %v980
    %v982 = vrot.slane %v965, 4
    %v983 = vsel %vm662, %v982, %v941
    %v984 = vrot.slane %v941, 4
    %v985 = vsel %vm662, %v965, %v984
    %v986 = vrot.slane %v969, 4
    %v987 = vsel %vm662, %v986, %v945
    %v988 = vrot.slane %v945, 4
    %v989 = vsel %vm662, %v969, %v988
    %v990 = vrot.slane %v977, 4
    %v991 = vsel %vm662, %v990, %v953
    %v992 = vrot.slane %v953, 4
    %v993 = vsel %vm662, %v977, %v992
    %v994 = vrot.slane %v981, 4
    %v995 = vsel %vm662, %v994, %v957
    %v996 = vrot.slane %v957, 4
    %v997 = vsel %vm662, %v981, %v996
    %v998 = vrot.slane %v659, 4
    %v999 = vsel %vm662, 0.0, %v998
    %v1001 = vunpack.c.l.s4 1983009808
    %v1002 = vunpack.c.0.s8 %v1001
    %v1003 = vperm.slane %v659, %v1002
    %v1005 = vunpack.c.l.s4 1983009808
    %v1006 = vunpack.c.0.s8 %v1005
    %v1007 = vperm.slane %v999, %v1006
    %v1008 = vrot.slane %v1003, 4
    %v1009 = vsel %vm662, 0.0, %v1008
    %v1011 = vunpack.c.l.s4 1934713408
    %v1012 = vunpack.c.0.s8 %v1011
    %v1013 = vperm.slane %v1003, %v1012
    %v1015 = vunpack.c.l.s4 1934713408
    %v1016 = vunpack.c.0.s8 %v1015
    %v1017 = vperm.slane %v1009, %v1016
    %v1018 = vrot.slane %v1007, 4
    %v1019 = vsel %vm662, 0.0, %v1018
    %v1021 = vunpack.c.l.s4 1934713408
    %v1022 = vunpack.c.0.s8 %v1021
    %v1023 = vperm.slane %v1007, %v1022
    %v1025 = vunpack.c.l.s4 1934713408
    %v1026 = vunpack.c.0.s8 %v1025
    %v1027 = vperm.slane %v1019, %v1026
    %v1028 = vrot.slane %v1013, 4
    %v1029 = vsel %vm662, 0.0, %v1028
    %v1030 = vrot.slane %v1017, 4
    %v1031 = vsel %vm662, 0.0, %v1030
    %v1032 = vrot.slane %v1023, 4
    %v1033 = vsel %vm662, 0.0, %v1032
    %v1034 = vrot.slane %v1027, 4
    %v1035 = vsel %vm662, 0.0, %v1034
    %vm1036 = vcmask 203776
    %v1037 = vsel %vm1036, %v759, 0.0
    %v1038 = vsel %vm1036, %v871, 0.0
    %v1039 = vadd.f32 %v1037, %v1038
    %v1040 = vsel %vm1036, %v983, 0.0
    %v1041 = vadd.f32 %v1039, %v1040
    %vm1042 = vcmask 196608
    %v1043 = vsel %vm1042, %v1013, 0.0
    %v1044 = vadd.f32 %v1041, %v1043
    %v1045 = vrot.slane %v1044, 4
    %v1046 = vadd.f32 %v1044, %v1045
    %v1047 = vrot.slane %v1046, 2
    %v1048 = vadd.f32 %v1046, %v1047
    %v1049 = vrot.slane %v1048, 1
    %v1050 = vadd.f32 %v1048, %v1049
    %v1051 = vsel %vm1036, %v761, 0.0
    %v1052 = vsel %vm1036, %v873, 0.0
    %v1053 = vadd.f32 %v1051, %v1052
    %v1054 = vsel %vm1036, %v985, 0.0
    %v1055 = vadd.f32 %v1053, %v1054
    %v1056 = vsel %vm1042, %v1029, 0.0
    %v1057 = vadd.f32 %v1055, %v1056
    %v1058 = vrot.slane %v1057, 4
    %v1059 = vadd.f32 %v1057, %v1058
    %v1060 = vrot.slane %v1059, 2
    %v1061 = vadd.f32 %v1059, %v1060
    %v1062 = vrot.slane %v1061, 1
    %v1063 = vadd.f32 %v1061, %v1062
    %v1064 = vsel %vm1036, %v763, 0.0
    %v1065 = vsel %vm1036, %v875, 0.0
    %v1066 = vadd.f32 %v1064, %v1065
    %v1067 = vsel %vm1036, %v987, 0.0
    %v1068 = vadd.f32 %v1066, %v1067
    %v1069 = vsel %vm1042, %v1017, 0.0
    %v1070 = vadd.f32 %v1068, %v1069
    %v1071 = vrot.slane %v1070, 4
    %v1072 = vadd.f32 %v1070, %v1071
    %v1073 = vrot.slane %v1072, 2
    %v1074 = vadd.f32 %v1072, %v1073
    %v1075 = vrot.slane %v1074, 1
    %v1076 = vadd.f32 %v1074, %v1075
    %v1077 = vsel %vm1036, %v765, 0.0
    %v1078 = vsel %vm1036, %v877, 0.0
    %v1079 = vadd.f32 %v1077, %v1078
    %v1080 = vsel %vm1036, %v989, 0.0
    %v1081 = vadd.f32 %v1079, %v1080
    %v1082 = vsel %vm1042, %v1031, 0.0
    %v1083 = vadd.f32 %v1081, %v1082
    %v1084 = vrot.slane %v1083, 4
    %v1085 = vadd.f32 %v1083, %v1084
    %v1086 = vrot.slane %v1085, 2
    %v1087 = vadd.f32 %v1085, %v1086
    %v1088 = vrot.slane %v1087, 1
    %v1089 = vadd.f32 %v1087, %v1088
    %v1090 = vsel %vm1036, %v767, 0.0
    %v1091 = vsel %vm1036, %v879, 0.0
    %v1092 = vadd.f32 %v1090, %v1091
    %v1093 = vsel %vm1036, %v991, 0.0
    %v1094 = vadd.f32 %v1092, %v1093
    %v1095 = vsel %vm1042, %v1023, 0.0
    %v1096 = vadd.f32 %v1094, %v1095
    %v1097 = vrot.slane %v1096, 4
    %v1098 = vadd.f32 %v1096, %v1097
    %v1099 = vrot.slane %v1098, 2
    %v1100 = vadd.f32 %v1098, %v1099
    %v1101 = vrot.slane %v1100, 1
    %v1102 = vadd.f32 %v1100, %v1101
    %v1103 = vsel %vm1036, %v769, 0.0
    %v1104 = vsel %vm1036, %v881, 0.0
    %v1105 = vadd.f32 %v1103, %v1104
    %v1106 = vsel %vm1036, %v993, 0.0
    %v1107 = vadd.f32 %v1105, %v1106
    %v1108 = vsel %vm1042, %v1033, 0.0
    %v1109 = vadd.f32 %v1107, %v1108
    %v1110 = vrot.slane %v1109, 4
    %v1111 = vadd.f32 %v1109, %v1110
    %v1112 = vrot.slane %v1111, 2
    %v1113 = vadd.f32 %v1111, %v1112
    %v1114 = vrot.slane %v1113, 1
    %v1115 = vadd.f32 %v1113, %v1114
    %v1116 = vsel %vm1036, %v771, 0.0
    %v1117 = vsel %vm1036, %v883, 0.0
    %v1118 = vadd.f32 %v1116, %v1117
    %v1119 = vsel %vm1036, %v995, 0.0
    %v1120 = vadd.f32 %v1118, %v1119
    %v1121 = vsel %vm1042, %v1027, 0.0
    %v1122 = vadd.f32 %v1120, %v1121
    %v1123 = vrot.slane %v1122, 4
    %v1124 = vadd.f32 %v1122, %v1123
    %v1125 = vrot.slane %v1124, 2
    %v1126 = vadd.f32 %v1124, %v1125
    %v1127 = vrot.slane %v1126, 1
    %v1128 = vadd.f32 %v1126, %v1127
    %v1129 = vsel %vm1036, %v773, 0.0
    %v1130 = vsel %vm1036, %v885, 0.0
    %v1131 = vadd.f32 %v1129, %v1130
    %v1132 = vsel %vm1036, %v997, 0.0
    %v1133 = vadd.f32 %v1131, %v1132
    %v1134 = vsel %vm1042, %v1035, 0.0
    %v1135 = vadd.f32 %v1133, %v1134
    %v1136 = vrot.slane %v1135, 4
    %v1137 = vadd.f32 %v1135, %v1136
    %v1138 = vrot.slane %v1137, 2
    %v1139 = vadd.f32 %v1137, %v1138
    %v1140 = vrot.slane %v1139, 1
    %v1141 = vadd.f32 %v1139, %v1140
    %v1142 = vrcp.pop %v1050
    %v1143 = vmul.f32 %v1050, %v1142
    %v1144 = vsub.f32 1.0, %v1143
    %v1145 = vmul.f32 %v1142, %v1144
    %v1146 = vadd.f32 %v1142, %v1145
    %vm1147 = vweird.f32 %v1050
    %vm1148 = vweird.f32 %v1142
    %vm1149 = vmor %vm1147, %vm1148
    %v1150 = vsel %vm1149, %v1142, %v1146
    %v1151 = vand.u32 2147483647, %v1050
    %vm1152 = vcmp.eq.f32.partialorder %v1151, 8.507059e+37
    %v1153 = vand.u32 %v1050, 2147483648
    %v1154 = vor.u32 1.1754944e-38, %v1153
    %v1155 = vsel %vm1152, %v1154, %v1150
    %v1156 = vrcp.pop %v1063
    %v1157 = vmul.f32 %v1063, %v1156
    %v1158 = vsub.f32 1.0, %v1157
    %v1159 = vmul.f32 %v1156, %v1158
    %v1160 = vadd.f32 %v1156, %v1159
    %vm1161 = vweird.f32 %v1063
    %vm1162 = vweird.f32 %v1156
    %vm1163 = vmor %vm1161, %vm1162
    %v1164 = vsel %vm1163, %v1156, %v1160
    %v1165 = vand.u32 2147483647, %v1063
    %vm1166 = vcmp.eq.f32.partialorder %v1165, 8.507059e+37
    %v1167 = vand.u32 %v1063, 2147483648
    %v1168 = vor.u32 1.1754944e-38, %v1167
    %v1169 = vsel %vm1166, %v1168, %v1164
    %v1170 = vrcp.pop %v1076
    %v1171 = vmul.f32 %v1076, %v1170
    %v1172 = vsub.f32 1.0, %v1171
    %v1173 = vmul.f32 %v1170, %v1172
    %v1174 = vadd.f32 %v1170, %v1173
    %vm1175 = vweird.f32 %v1076
    %vm1176 = vweird.f32 %v1170
    %vm1177 = vmor %vm1175, %vm1176
    %v1178 = vsel %vm1177, %v1170, %v1174
    %v1179 = vand.u32 2147483647, %v1076
    %vm1180 = vcmp.eq.f32.partialorder %v1179, 8.507059e+37
    %v1181 = vand.u32 %v1076, 2147483648
    %v1182 = vor.u32 1.1754944e-38, %v1181
    %v1183 = vsel %vm1180, %v1182, %v1178
    %v1184 = vrcp.pop %v1089
    %v1185 = vmul.f32 %v1089, %v1184
    %v1186 = vsub.f32 1.0, %v1185
    %v1187 = vmul.f32 %v1184, %v1186
    %v1188 = vadd.f32 %v1184, %v1187
    %vm1189 = vweird.f32 %v1089
    %vm1190 = vweird.f32 %v1184
    %vm1191 = vmor %vm1189, %vm1190
    %v1192 = vsel %vm1191, %v1184, %v1188
    %v1193 = vand.u32 2147483647, %v1089
    %vm1194 = vcmp.eq.f32.partialorder %v1193, 8.507059e+37
    %v1195 = vand.u32 %v1089, 2147483648
    %v1196 = vor.u32 1.1754944e-38, %v1195
    %v1197 = vsel %vm1194, %v1196, %v1192
    %v1198 = vrcp.pop %v1102
    %v1199 = vmul.f32 %v1102, %v1198
    %v1200 = vsub.f32 1.0, %v1199
    %v1201 = vmul.f32 %v1198, %v1200
    %v1202 = vadd.f32 %v1198, %v1201
    %vm1203 = vweird.f32 %v1102
    %vm1204 = vweird.f32 %v1198
    %vm1205 = vmor %vm1203, %vm1204
    %v1206 = vsel %vm1205, %v1198, %v1202
    %v1207 = vand.u32 2147483647, %v1102
    %vm1208 = vcmp.eq.f32.partialorder %v1207, 8.507059e+37
    %v1209 = vand.u32 %v1102, 2147483648
    %v1210 = vor.u32 1.1754944e-38, %v1209
    %v1211 = vsel %vm1208, %v1210, %v1206
    %v1212 = vrcp.pop %v1115
    %v1213 = vmul.f32 %v1115, %v1212
    %v1214 = vsub.f32 1.0, %v1213
    %v1215 = vmul.f32 %v1212, %v1214
    %v1216 = vadd.f32 %v1212, %v1215
    %vm1217 = vweird.f32 %v1115
    %vm1218 = vweird.f32 %v1212
    %vm1219 = vmor %vm1217, %vm1218
    %v1220 = vsel %vm1219, %v1212, %v1216
    %v1221 = vand.u32 2147483647, %v1115
    %vm1222 = vcmp.eq.f32.partialorder %v1221, 8.507059e+37
    %v1223 = vand.u32 %v1115, 2147483648
    %v1224 = vor.u32 1.1754944e-38, %v1223
    %v1225 = vsel %vm1222, %v1224, %v1220
    %v1226 = vrcp.pop %v1128
    %v1227 = vmul.f32 %v1128, %v1226
    %v1228 = vsub.f32 1.0, %v1227
    %v1229 = vmul.f32 %v1226, %v1228
    %v1230 = vadd.f32 %v1226, %v1229
    %vm1231 = vweird.f32 %v1128
    %vm1232 = vweird.f32 %v1226
    %vm1233 = vmor %vm1231, %vm1232
    %v1234 = vsel %vm1233, %v1226, %v1230
    %v1235 = vand.u32 2147483647, %v1128
    %vm1236 = vcmp.eq.f32.partialorder %v1235, 8.507059e+37
    %v1237 = vand.u32 %v1128, 2147483648
    %v1238 = vor.u32 1.1754944e-38, %v1237
    %v1239 = vsel %vm1236, %v1238, %v1234
    %v1240 = vrcp.pop %v1141
    %v1241 = vmul.f32 %v1141, %v1240
    %v1242 = vsub.f32 1.0, %v1241
    %v1243 = vmul.f32 %v1240, %v1242
    %v1244 = vadd.f32 %v1240, %v1243
    %vm1245 = vweird.f32 %v1141
    %vm1246 = vweird.f32 %v1240
    %vm1247 = vmor %vm1245, %vm1246
    %v1248 = vsel %vm1247, %v1240, %v1244
    %v1249 = vand.u32 2147483647, %v1141
    %vm1250 = vcmp.eq.f32.partialorder %v1249, 8.507059e+37
    %v1251 = vand.u32 %v1141, 2147483648
    %v1252 = vor.u32 1.1754944e-38, %v1251
    %v1253 = vsel %vm1250, %v1252, %v1248
    %v1254 = vmul.f32 %v759, %v1155
    %v1255 = vmul.f32 %v871, %v1155
    %v1256 = vmul.f32 %v983, %v1155
    %v1257 = vmul.f32 %v1013, %v1155
    %v1258 = vmul.f32 %v761, %v1169
    %v1259 = vmul.f32 %v873, %v1169
    %v1260 = vmul.f32 %v985, %v1169
    %v1261 = vmul.f32 %v1029, %v1169
    %v1262 = vmul.f32 %v763, %v1183
    %v1263 = vmul.f32 %v875, %v1183
    %v1264 = vmul.f32 %v987, %v1183
    %v1265 = vmul.f32 %v1017, %v1183
    %v1266 = vmul.f32 %v765, %v1197
    %v1267 = vmul.f32 %v877, %v1197
    %v1268 = vmul.f32 %v989, %v1197
    %v1269 = vmul.f32 %v1031, %v1197
    %v1270 = vmul.f32 %v767, %v1211
    %v1271 = vmul.f32 %v879, %v1211
    %v1272 = vmul.f32 %v991, %v1211
    %v1273 = vmul.f32 %v1023, %v1211
    %v1274 = vmul.f32 %v769, %v1225
    %v1275 = vmul.f32 %v881, %v1225
    %v1276 = vmul.f32 %v993, %v1225
    %v1277 = vmul.f32 %v1033, %v1225
    %v1278 = vmul.f32 %v771, %v1239
    %v1279 = vmul.f32 %v883, %v1239
    %v1280 = vmul.f32 %v995, %v1239
    %v1281 = vmul.f32 %v1027, %v1239
    %v1282 = vmul.f32 %v773, %v1253
    %v1283 = vmul.f32 %v885, %v1253
    %v1284 = vmul.f32 %v997, %v1253
    %v1285 = vmul.f32 %v1035, %v1253
    %v1286 = vrot.slane %v1262, 4
    %v1287 = vsel %vm662, %v1286, %v1254
    %v1288 = vrot.slane %v1254, 4
    %v1289 = vsel %vm662, %v1262, %v1288
    %v1291 = vunpack.c.l.s4 1983009808
    %v1292 = vunpack.c.0.s8 %v1291
    %v1293 = vperm.slane %v1287, %v1292
    %v1295 = vunpack.c.l.s4 1983009808
    %v1296 = vunpack.c.0.s8 %v1295
    %v1297 = vperm.slane %v1289, %v1296
    %v1298 = vrot.slane %v1266, 4
    %v1299 = vsel %vm662, %v1298, %v1258
    %v1300 = vrot.slane %v1258, 4
    %v1301 = vsel %vm662, %v1266, %v1300
    %v1303 = vunpack.c.l.s4 1983009808
    %v1304 = vunpack.c.0.s8 %v1303
    %v1305 = vperm.slane %v1299, %v1304
    %v1307 = vunpack.c.l.s4 1983009808
    %v1308 = vunpack.c.0.s8 %v1307
    %v1309 = vperm.slane %v1301, %v1308
    %v1310 = vrot.slane %v1278, 4
    %v1311 = vsel %vm662, %v1310, %v1270
    %v1312 = vrot.slane %v1270, 4
    %v1313 = vsel %vm662, %v1278, %v1312
    %v1315 = vunpack.c.l.s4 1983009808
    %v1316 = vunpack.c.0.s8 %v1315
    %v1317 = vperm.slane %v1311, %v1316
    %v1319 = vunpack.c.l.s4 1983009808
    %v1320 = vunpack.c.0.s8 %v1319
    %v1321 = vperm.slane %v1313, %v1320
    %v1322 = vrot.slane %v1282, 4
    %v1323 = vsel %vm662, %v1322, %v1274
    %v1324 = vrot.slane %v1274, 4
    %v1325 = vsel %vm662, %v1282, %v1324
    %v1327 = vunpack.c.l.s4 1983009808
    %v1328 = vunpack.c.0.s8 %v1327
    %v1329 = vperm.slane %v1323, %v1328
    %v1331 = vunpack.c.l.s4 1983009808
    %v1332 = vunpack.c.0.s8 %v1331
    %v1333 = vperm.slane %v1325, %v1332
    %v1334 = vrot.slane %v1305, 4
    %v1335 = vsel %vm662, %v1334, %v1293
    %v1336 = vrot.slane %v1293, 4
    %v1337 = vsel %vm662, %v1305, %v1336
    %v1339 = vunpack.c.l.s4 1934713408
    %v1340 = vunpack.c.0.s8 %v1339
    %v1341 = vperm.slane %v1335, %v1340
    %v1343 = vunpack.c.l.s4 1934713408
    %v1344 = vunpack.c.0.s8 %v1343
    %v1345 = vperm.slane %v1337, %v1344
    %v1346 = vrot.slane %v1309, 4
    %v1347 = vsel %vm662, %v1346, %v1297
    %v1348 = vrot.slane %v1297, 4
    %v1349 = vsel %vm662, %v1309, %v1348
    %v1351 = vunpack.c.l.s4 1934713408
    %v1352 = vunpack.c.0.s8 %v1351
    %v1353 = vperm.slane %v1347, %v1352
    %v1355 = vunpack.c.l.s4 1934713408
    %v1356 = vunpack.c.0.s8 %v1355
    %v1357 = vperm.slane %v1349, %v1356
    %v1358 = vrot.slane %v1329, 4
    %v1359 = vsel %vm662, %v1358, %v1317
    %v1360 = vrot.slane %v1317, 4
    %v1361 = vsel %vm662, %v1329, %v1360
    %v1363 = vunpack.c.l.s4 1934713408
    %v1364 = vunpack.c.0.s8 %v1363
    %v1365 = vperm.slane %v1359, %v1364
    %v1367 = vunpack.c.l.s4 1934713408
    %v1368 = vunpack.c.0.s8 %v1367
    %v1369 = vperm.slane %v1361, %v1368
    %v1370 = vrot.slane %v1333, 4
    %v1371 = vsel %vm662, %v1370, %v1321
    %v1372 = vrot.slane %v1321, 4
    %v1373 = vsel %vm662, %v1333, %v1372
    %v1375 = vunpack.c.l.s4 1934713408
    %v1376 = vunpack.c.0.s8 %v1375
    %v1377 = vperm.slane %v1371, %v1376
    %v1379 = vunpack.c.l.s4 1934713408
    %v1380 = vunpack.c.0.s8 %v1379
    %v1381 = vperm.slane %v1373, %v1380
    %v1382 = vrot.slane %v1365, 4
    %v1383 = vsel %vm662, %v1382, %v1341
    %v1384 = vrot.slane %v1341, 4
    %v1385 = vsel %vm662, %v1365, %v1384
    %v1386 = vrot.slane %v1369, 4
    %v1387 = vsel %vm662, %v1386, %v1345
    %v1388 = vrot.slane %v1345, 4
    %v1389 = vsel %vm662, %v1369, %v1388
    %v1390 = vrot.slane %v1377, 4
    %v1391 = vsel %vm662, %v1390, %v1353
    %v1392 = vrot.slane %v1353, 4
    %v1393 = vsel %vm662, %v1377, %v1392
    %v1394 = vrot.slane %v1381, 4
    %v1395 = vsel %vm662, %v1394, %v1357
    %v1396 = vrot.slane %v1357, 4
    %v1397 = vsel %vm662, %v1381, %v1396
    %v1398 = vrot.slane %v1263, 4
    %v1399 = vsel %vm662, %v1398, %v1255
    %v1400 = vrot.slane %v1255, 4
    %v1401 = vsel %vm662, %v1263, %v1400
    %v1403 = vunpack.c.l.s4 1983009808
    %v1404 = vunpack.c.0.s8 %v1403
    %v1405 = vperm.slane %v1399, %v1404
    %v1407 = vunpack.c.l.s4 1983009808
    %v1408 = vunpack.c.0.s8 %v1407
    %v1409 = vperm.slane %v1401, %v1408
    %v1410 = vrot.slane %v1267, 4
    %v1411 = vsel %vm662, %v1410, %v1259
    %v1412 = vrot.slane %v1259, 4
    %v1413 = vsel %vm662, %v1267, %v1412
    %v1415 = vunpack.c.l.s4 1983009808
    %v1416 = vunpack.c.0.s8 %v1415
    %v1417 = vperm.slane %v1411, %v1416
    %v1419 = vunpack.c.l.s4 1983009808
    %v1420 = vunpack.c.0.s8 %v1419
    %v1421 = vperm.slane %v1413, %v1420
    %v1422 = vrot.slane %v1279, 4
    %v1423 = vsel %vm662, %v1422, %v1271
    %v1424 = vrot.slane %v1271, 4
    %v1425 = vsel %vm662, %v1279, %v1424
    %v1427 = vunpack.c.l.s4 1983009808
    %v1428 = vunpack.c.0.s8 %v1427
    %v1429 = vperm.slane %v1423, %v1428
    %v1431 = vunpack.c.l.s4 1983009808
    %v1432 = vunpack.c.0.s8 %v1431
    %v1433 = vperm.slane %v1425, %v1432
    %v1434 = vrot.slane %v1283, 4
    %v1435 = vsel %vm662, %v1434, %v1275
    %v1436 = vrot.slane %v1275, 4
    %v1437 = vsel %vm662, %v1283, %v1436
    %v1439 = vunpack.c.l.s4 1983009808
    %v1440 = vunpack.c.0.s8 %v1439
    %v1441 = vperm.slane %v1435, %v1440
    %v1443 = vunpack.c.l.s4 1983009808
    %v1444 = vunpack.c.0.s8 %v1443
    %v1445 = vperm.slane %v1437, %v1444
    %v1446 = vrot.slane %v1417, 4
    %v1447 = vsel %vm662, %v1446, %v1405
    %v1448 = vrot.slane %v1405, 4
    %v1449 = vsel %vm662, %v1417, %v1448
    %v1451 = vunpack.c.l.s4 1934713408
    %v1452 = vunpack.c.0.s8 %v1451
    %v1453 = vperm.slane %v1447, %v1452
    %v1455 = vunpack.c.l.s4 1934713408
    %v1456 = vunpack.c.0.s8 %v1455
    %v1457 = vperm.slane %v1449, %v1456
    %v1458 = vrot.slane %v1421, 4
    %v1459 = vsel %vm662, %v1458, %v1409
    %v1460 = vrot.slane %v1409, 4
    %v1461 = vsel %vm662, %v1421, %v1460
    %v1463 = vunpack.c.l.s4 1934713408
    %v1464 = vunpack.c.0.s8 %v1463
    %v1465 = vperm.slane %v1459, %v1464
    %v1467 = vunpack.c.l.s4 1934713408
    %v1468 = vunpack.c.0.s8 %v1467
    %v1469 = vperm.slane %v1461, %v1468
    %v1470 = vrot.slane %v1441, 4
    %v1471 = vsel %vm662, %v1470, %v1429
    %v1472 = vrot.slane %v1429, 4
    %v1473 = vsel %vm662, %v1441, %v1472
    %v1475 = vunpack.c.l.s4 1934713408
    %v1476 = vunpack.c.0.s8 %v1475
    %v1477 = vperm.slane %v1471, %v1476
    %v1479 = vunpack.c.l.s4 1934713408
    %v1480 = vunpack.c.0.s8 %v1479
    %v1481 = vperm.slane %v1473, %v1480
    %v1482 = vrot.slane %v1445, 4
    %v1483 = vsel %vm662, %v1482, %v1433
    %v1484 = vrot.slane %v1433, 4
    %v1485 = vsel %vm662, %v1445, %v1484
    %v1487 = vunpack.c.l.s4 1934713408
    %v1488 = vunpack.c.0.s8 %v1487
    %v1489 = vperm.slane %v1483, %v1488
    %v1491 = vunpack.c.l.s4 1934713408
    %v1492 = vunpack.c.0.s8 %v1491
    %v1493 = vperm.slane %v1485, %v1492
    %v1494 = vrot.slane %v1477, 4
    %v1495 = vsel %vm662, %v1494, %v1453
    %v1496 = vrot.slane %v1453, 4
    %v1497 = vsel %vm662, %v1477, %v1496
    %v1498 = vrot.slane %v1481, 4
    %v1499 = vsel %vm662, %v1498, %v1457
    %v1500 = vrot.slane %v1457, 4
    %v1501 = vsel %vm662, %v1481, %v1500
    %v1502 = vrot.slane %v1489, 4
    %v1503 = vsel %vm662, %v1502, %v1465
    %v1504 = vrot.slane %v1465, 4
    %v1505 = vsel %vm662, %v1489, %v1504
    %v1506 = vrot.slane %v1493, 4
    %v1507 = vsel %vm662, %v1506, %v1469
    %v1508 = vrot.slane %v1469, 4
    %v1509 = vsel %vm662, %v1493, %v1508
    %v1510 = vrot.slane %v1264, 4
    %v1511 = vsel %vm662, %v1510, %v1256
    %v1512 = vrot.slane %v1256, 4
    %v1513 = vsel %vm662, %v1264, %v1512
    %v1515 = vunpack.c.l.s4 1983009808
    %v1516 = vunpack.c.0.s8 %v1515
    %v1517 = vperm.slane %v1511, %v1516
    %v1519 = vunpack.c.l.s4 1983009808
    %v1520 = vunpack.c.0.s8 %v1519
    %v1521 = vperm.slane %v1513, %v1520
    %v1522 = vrot.slane %v1268, 4
    %v1523 = vsel %vm662, %v1522, %v1260
    %v1524 = vrot.slane %v1260, 4
    %v1525 = vsel %vm662, %v1268, %v1524
    %v1527 = vunpack.c.l.s4 1983009808
    %v1528 = vunpack.c.0.s8 %v1527
    %v1529 = vperm.slane %v1523, %v1528
    %v1531 = vunpack.c.l.s4 1983009808
    %v1532 = vunpack.c.0.s8 %v1531
    %v1533 = vperm.slane %v1525, %v1532
    %v1534 = vrot.slane %v1280, 4
    %v1535 = vsel %vm662, %v1534, %v1272
    %v1536 = vrot.slane %v1272, 4
    %v1537 = vsel %vm662, %v1280, %v1536
    %v1539 = vunpack.c.l.s4 1983009808
    %v1540 = vunpack.c.0.s8 %v1539
    %v1541 = vperm.slane %v1535, %v1540
    %v1543 = vunpack.c.l.s4 1983009808
    %v1544 = vunpack.c.0.s8 %v1543
    %v1545 = vperm.slane %v1537, %v1544
    %v1546 = vrot.slane %v1284, 4
    %v1547 = vsel %vm662, %v1546, %v1276
    %v1548 = vrot.slane %v1276, 4
    %v1549 = vsel %vm662, %v1284, %v1548
    %v1551 = vunpack.c.l.s4 1983009808
    %v1552 = vunpack.c.0.s8 %v1551
    %v1553 = vperm.slane %v1547, %v1552
    %v1555 = vunpack.c.l.s4 1983009808
    %v1556 = vunpack.c.0.s8 %v1555
    %v1557 = vperm.slane %v1549, %v1556
    %v1558 = vrot.slane %v1529, 4
    %v1559 = vsel %vm662, %v1558, %v1517
    %v1560 = vrot.slane %v1517, 4
    %v1561 = vsel %vm662, %v1529, %v1560
    %v1563 = vunpack.c.l.s4 1934713408
    %v1564 = vunpack.c.0.s8 %v1563
    %v1565 = vperm.slane %v1559, %v1564
    %v1567 = vunpack.c.l.s4 1934713408
    %v1568 = vunpack.c.0.s8 %v1567
    %v1569 = vperm.slane %v1561, %v1568
    %v1570 = vrot.slane %v1533, 4
    %v1571 = vsel %vm662, %v1570, %v1521
    %v1572 = vrot.slane %v1521, 4
    %v1573 = vsel %vm662, %v1533, %v1572
    %v1575 = vunpack.c.l.s4 1934713408
    %v1576 = vunpack.c.0.s8 %v1575
    %v1577 = vperm.slane %v1571, %v1576
    %v1579 = vunpack.c.l.s4 1934713408
    %v1580 = vunpack.c.0.s8 %v1579
    %v1581 = vperm.slane %v1573, %v1580
    %v1582 = vrot.slane %v1553, 4
    %v1583 = vsel %vm662, %v1582, %v1541
    %v1584 = vrot.slane %v1541, 4
    %v1585 = vsel %vm662, %v1553, %v1584
    %v1587 = vunpack.c.l.s4 1934713408
    %v1588 = vunpack.c.0.s8 %v1587
    %v1589 = vperm.slane %v1583, %v1588
    %v1591 = vunpack.c.l.s4 1934713408
    %v1592 = vunpack.c.0.s8 %v1591
    %v1593 = vperm.slane %v1585, %v1592
    %v1594 = vrot.slane %v1557, 4
    %v1595 = vsel %vm662, %v1594, %v1545
    %v1596 = vrot.slane %v1545, 4
    %v1597 = vsel %vm662, %v1557, %v1596
    %v1599 = vunpack.c.l.s4 1934713408
    %v1600 = vunpack.c.0.s8 %v1599
    %v1601 = vperm.slane %v1595, %v1600
    %v1603 = vunpack.c.l.s4 1934713408
    %v1604 = vunpack.c.0.s8 %v1603
    %v1605 = vperm.slane %v1597, %v1604
    %v1606 = vrot.slane %v1589, 4
    %v1607 = vsel %vm662, %v1606, %v1565
    %v1608 = vrot.slane %v1565, 4
    %v1609 = vsel %vm662, %v1589, %v1608
    %v1610 = vrot.slane %v1593, 4
    %v1611 = vsel %vm662, %v1610, %v1569
    %v1612 = vrot.slane %v1569, 4
    %v1613 = vsel %vm662, %v1593, %v1612
    %v1614 = vrot.slane %v1601, 4
    %v1615 = vsel %vm662, %v1614, %v1577
    %v1616 = vrot.slane %v1577, 4
    %v1617 = vsel %vm662, %v1601, %v1616
    %v1618 = vrot.slane %v1605, 4
    %v1619 = vsel %vm662, %v1618, %v1581
    %v1620 = vrot.slane %v1581, 4
    %v1621 = vsel %vm662, %v1605, %v1620
    %v1622 = vrot.slane %v1265, 4
    %v1623 = vsel %vm662, %v1622, %v1257
    %v1625 = vunpack.c.l.s4 1983009808
    %v1626 = vunpack.c.0.s8 %v1625
    %v1627 = vperm.slane %v1623, %v1626
    %v1628 = vrot.slane %v1269, 4
    %v1629 = vsel %vm662, %v1628, %v1261
    %v1631 = vunpack.c.l.s4 1983009808
    %v1632 = vunpack.c.0.s8 %v1631
    %v1633 = vperm.slane %v1629, %v1632
    %v1634 = vrot.slane %v1281, 4
    %v1635 = vsel %vm662, %v1634, %v1273
    %v1637 = vunpack.c.l.s4 1983009808
    %v1638 = vunpack.c.0.s8 %v1637
    %v1639 = vperm.slane %v1635, %v1638
    %v1640 = vrot.slane %v1285, 4
    %v1641 = vsel %vm662, %v1640, %v1277
    %v1643 = vunpack.c.l.s4 1983009808
    %v1644 = vunpack.c.0.s8 %v1643
    %v1645 = vperm.slane %v1641, %v1644
    %v1646 = vrot.slane %v1633, 4
    %v1647 = vsel %vm662, %v1646, %v1627
    %v1649 = vunpack.c.l.s4 1934713408
    %v1650 = vunpack.c.0.s8 %v1649
    %v1651 = vperm.slane %v1647, %v1650
    %v1652 = vrot.slane %v1645, 4
    %v1653 = vsel %vm662, %v1652, %v1639
    %v1655 = vunpack.c.l.s4 1934713408
    %v1656 = vunpack.c.0.s8 %v1655
    %v1657 = vperm.slane %v1653, %v1656
    %v1658 = vrot.slane %v1657, 4
    %v1659 = vsel %vm662, %v1658, %v1651
    %1661 = vrot.lane.b32.xlu0 %v1385, 25
    %v1662 = vpop.permute.xlu0 %1661
    %1665 = vrot.lane.b32.xlu0 %v1387, 50
    %v1666 = vpop.permute.xlu0 %1665
    %1669 = vrot.lane.b32.xlu0 %v1389, 75
    %v1670 = vpop.permute.xlu0 %1669
    %1673 = vrot.lane.b32.xlu0 %v1391, 100
    %v1674 = vpop.permute.xlu0 %1673
    %1677 = vrot.lane.b32.xlu0 %v1393, 125
    %v1678 = vpop.permute.xlu0 %1677
    %1681 = vrot.lane.b32.xlu0 %v1395, 22
    %v1682 = vpop.permute.xlu0 %1681
    %1685 = vrot.lane.b32.xlu0 %v1397, 47
    %v1686 = vpop.permute.xlu0 %1685
    %1689 = vrot.lane.b32.xlu0 %v1495, 72
    %v1690 = vpop.permute.xlu0 %1689
    %1693 = vrot.lane.b32.xlu0 %v1497, 97
    %v1694 = vpop.permute.xlu0 %1693
    %1697 = vrot.lane.b32.xlu0 %v1499, 122
    %v1698 = vpop.permute.xlu0 %1697
    %1701 = vrot.lane.b32.xlu0 %v1501, 19
    %v1702 = vpop.permute.xlu0 %1701
    %1705 = vrot.lane.b32.xlu0 %v1503, 44
    %v1706 = vpop.permute.xlu0 %1705
    %1709 = vrot.lane.b32.xlu0 %v1505, 69
    %v1710 = vpop.permute.xlu0 %1709
    %1713 = vrot.lane.b32.xlu0 %v1507, 94
    %v1714 = vpop.permute.xlu0 %1713
    %1717 = vrot.lane.b32.xlu0 %v1509, 119
    %v1718 = vpop.permute.xlu0 %1717
    %1721 = vrot.lane.b32.xlu0 %v1607, 16
    %v1722 = vpop.permute.xlu0 %1721
    %1725 = vrot.lane.b32.xlu0 %v1609, 41
    %v1726 = vpop.permute.xlu0 %1725
    %1729 = vrot.lane.b32.xlu0 %v1611, 66
    %v1730 = vpop.permute.xlu0 %1729
    %1733 = vrot.lane.b32.xlu0 %v1613, 91
    %v1734 = vpop.permute.xlu0 %1733
    %1737 = vrot.lane.b32.xlu0 %v1615, 116
    %v1738 = vpop.permute.xlu0 %1737
    %1741 = vrot.lane.b32.xlu0 %v1617, 13
    %v1742 = vpop.permute.xlu0 %1741
    %1745 = vrot.lane.b32.xlu0 %v1619, 38
    %v1746 = vpop.permute.xlu0 %1745
    %1749 = vrot.lane.b32.xlu0 %v1621, 63
    %v1750 = vpop.permute.xlu0 %1749
    %1753 = vrot.lane.b32.xlu0 %v1659, 88
    %v1754 = vpop.permute.xlu0 %1753
    %v1756 = vsel %vm1036, %v1383, %v1662
    %vm1757 = vcmask 408576
    %v1758 = vsel %vm1757, %v1756, %v1666
    %vm1759 = vcmask 613376
    %v1760 = vsel %vm1759, %v1758, %v1670
    %vm1761 = vcmask 818176
    %v1762 = vsel %vm1761, %v1760, %v1674
    %vm1763 = vcmask 1022976
    %v1764 = vsel %vm1763, %v1762, %v1678
    %vm1765 = vcmask 179200
    %v1766 = vsel %vm1765, %v1678, %v1682
    %vm1767 = vcmask 384000
    %v1768 = vsel %vm1767, %v1766, %v1686
    %vm1769 = vcmask 588800
    %v1770 = vsel %vm1769, %v1768, %v1690
    %v1771 = vsel %vm320, %v1770, %v1694
    %vm1772 = vcmask 998400
    %v1773 = vsel %vm1772, %v1771, %v1698
    %vm1774 = vcmask 154624
    %v1775 = vsel %vm1774, %v1698, %v1702
    %vm1776 = vcmask 359424
    %v1777 = vsel %vm1776, %v1775, %v1706
    %vm1778 = vcmask 564224
    %v1779 = vsel %vm1778, %v1777, %v1710
    %vm1780 = vcmask 769024
    %v1781 = vsel %vm1780, %v1779, %v1714
    %vm1782 = vcmask 973824
    %v1783 = vsel %vm1782, %v1781, %v1718
    %vm1784 = vcmask 130048
    %v1785 = vsel %vm1784, %v1718, %v1722
    %vm1786 = vcmask 334848
    %v1787 = vsel %vm1786, %v1785, %v1726
    %vm1788 = vcmask 539648
    %v1789 = vsel %vm1788, %v1787, %v1730
    %vm1790 = vcmask 744448
    %v1791 = vsel %vm1790, %v1789, %v1734
    %vm1792 = vcmask 949248
    %v1793 = vsel %vm1792, %v1791, %v1738
    %vm1794 = vcmask 105472
    %v1795 = vsel %vm1794, %v1738, %v1742
    %vm1796 = vcmask 310272
    %v1797 = vsel %vm1796, %v1795, %v1746
    %vm1798 = vcmask 515072
    %v1799 = vsel %vm1798, %v1797, %v1750
    %vm1800 = vcmask 719872
    %v1801 = vsel %vm1800, %v1799, %v1754
    %1802 = vst [vmem:[#allocation11] sm:$0xff] %v1764
    %1803 = vst [vmem:[#allocation11 + $0x8] sm:$0xff] %v1773
    %1804 = vst [vmem:[#allocation11 + $0x10] sm:$0xff] %v1783
    %1805 = vst [vmem:[#allocation11 + $0x18] sm:$0xff] %v1793
    %1806 = vst.msk [vmem:[#allocation11 + $0x20] sm:$0xff] %vm545, %v1801
    // Predicated region
    $region42: #{tpu_custom_call.1} parent=1 // pred_check
      _
    $region43: #{tpu_custom_call.1} parent=1 // pred_check_branch
      %1808 = sbr.rel (0) target = $region45
    $region44: #{tpu_custom_call.1} parent=1 // pred_region
      %1810 = vsyncadd [#allocation4], 0
      %s1812 = sshll.u32 [#allocation11], 4
      %s1813 = int_to_ptr.vmem [resolvable:$true] %s1812
      %s1814 = sshll.u32 %s5, 4
      %s1815 = int_to_ptr.hbm [resolvable:$true] %s1814
      %1817 = dma.vmem_to_hbm [thread:$0]  %s1813, 640, %s1815, [#allocation4]
    $region45: #{tpu_custom_call.1} parent=1 // pred_fallthru
      _
    // Predicated region
    $region46: #{tpu_custom_call.1} parent=1 // pred_check
      _
    $region47: #{tpu_custom_call.1} parent=1 // pred_check_branch
      %1819 = sbr.rel (0) target = $region49
    $region48: #{tpu_custom_call.1} parent=1 // pred_region
      %1821 = dma.done [#allocation4], 640
    $region49: #{tpu_custom_call.1} parent=1 // pred_fallthru
      _
    %1822 = vsyncpa [#allocation3], 1
    %1823 = vsyncpa [#allocation6], 1
    %1824 = vsyncpa [#allocation9], 1
    %1825 = vsyncpa [#allocation4], 1

</llo_original>
